<compile_context>
chip_gen: v6e
topology: v6e:2x2x1
jax: 0.10.0
libtpu: 0.0.40
codegen_flags: <defaults>
</compile_context>

<pallas_src>
import math
import functools

import jax
import jax.numpy as jnp
import numpy as np
from jax import lax
from jax.experimental import pallas as pl
from jax.experimental.pallas import tpu as pltpu


def _loe_dcl_kernel(z_ref, out_ref, *, inv_sqrt_temp, scale_over_k):
    """One batch tile.  z_ref: (T, D, bb) with the batch axis on lanes."""
    z = z_ref[...].astype(jnp.float32)        # upcast once; bf16 HBM path supported
    T, D, bb = z.shape

    # Inverse L2 norms over D (== F.normalize eps=1e-12) with 1/sqrt(temp) folded in,
    # so sim[t,s] = <z_t, z_s> * inv[t] * inv[s] already carries the /temp factor.
    sumsq = jnp.sum(z * z, axis=1)                                # (T, bb)
    inv = lax.rsqrt(jnp.maximum(sumsq, 1e-24)) * inv_sqrt_temp    # (T, bb), EUP rsqrt

    def sim_ts(t, s):
        # Lane-dense VPU contraction over D with deferred normalization.
        raw = jnp.sum(z[t] * z[s], axis=0, keepdims=True)         # (1, bb)
        return raw * (inv[t:t + 1] * inv[s:s + 1])                # (1, bb)

    # Positive pairs (t, 0), t = 1..T-1.  log(pos) == sim exactly (no exp/log trip).
    log_pos = [sim_ts(t, 0) for t in range(1, T)]                 # each (1, bb)
    pos = [jnp.exp(lp) for lp in log_pos]

    # Off-diagonal sums over the transformed views only (s >= 1, s != t), built from
    # the UNIQUE pairs s < t: each exp feeds both row t and row s (symmetry halves
    # the contractions/exps).  The s == t diagonal is simply never computed.
    off = [jnp.zeros((1, bb), jnp.float32) for _ in range(1, T)]  # index t-1
    for t in range(2, T):
        for s in range(1, t):
            e = jnp.exp(sim_ts(t, s))
            off[t - 1] = off[t - 1] + e
            off[s - 1] = off[s - 1] + e

    sum_ln = jnp.zeros((1, bb), jnp.float32)
    sum_la = jnp.zeros((1, bb), jnp.float32)
    for i in range(T - 1):
        trans = off[i] + pos[i]                 # row sum over all s != t (T-1 terms)
        log_trans = jnp.log(trans)
        sum_ln = sum_ln + (log_trans - log_pos[i])
        # -log(1 - pos/trans) == log(trans) - log(trans - pos); trans - pos == off[i]
        # exactly, so no cancellation-prone subtraction is needed.
        sum_la = sum_la + (log_trans - jnp.log(off[i]))

    # Single lane-dense (2, bb) store: row 0 = loss_n terms, row 1 = loss_a terms.
    out_ref[...] = jnp.concatenate([sum_ln, sum_la], axis=0) * scale_over_k


def _round_up(x, m):
    return ((x + m - 1) // m) * m


def _pick_block(B, block_b):
    """Batch tile on the lane axis: multiple of 128, 128..4096, >=2 steps if B>128."""
    bb_cap = max(128, min(_round_up(block_b, 128), 4096))
    if B <= 128:
        return 128
    # Keep at least 2 grid steps so the "parallel" batch axis can shard across the
    # two TensorCores on v7x and the BlockSpec pipeline has steps to overlap.
    return min(bb_cap, _round_up(-(-B // 2), 128))


def loe_dcl_tdb(zt, B, temperature=0.1, block_b=2048):
    """LOEDCL on a pre-transposed (T, D, B) embedding tensor (batch on lanes).

    Producers that can emit (T, D, B) (ideally bf16) should call this directly to
    skip the HBM->HBM relayout that loe_dcl() performs.
    Returns (loss_n, loss_a), each (B,) float32.
    """
    T, D, Bin = zt.shape
    K = T - 1
    scale = 1.0 / abs(math.log(1.0 / K))

    bb = _pick_block(B, block_b)
    Bp = _round_up(Bin, bb)
    if Bp != Bin:
        # Padding mode is irrelevant for correctness (padded lanes are sliced off);
        # "edge" keeps every lane numerically benign.
        zt = jnp.pad(zt, ((0, 0), (0, 0), (0, Bp - Bin)), mode="edge")

    n_pairs = (T - 1) + (T - 1) * (T - 2) // 2          # unique dot products per sample
    cost = pl.CostEstimate(
        flops=int(B * (2 * D * n_pairs + 4 * n_pairs + 3 * T * D)),
        transcendentals=int(B * (n_pairs + 2 * (T - 1) + T)),
        bytes_accessed=int(B * T * D * zt.dtype.itemsize + 2 * B * 4),
    )

    kernel = functools.partial(
        _loe_dcl_kernel,
        inv_sqrt_temp=float(1.0 / math.sqrt(temperature)),
        scale_over_k=float(scale / K),
    )

    out = pl.pallas_call(
        kernel,
        out_shape=jax.ShapeDtypeStruct((2, Bp), jnp.float32),
        grid=(Bp // bb,),
        in_specs=[pl.BlockSpec((T, D, bb), lambda i: (0, 0, i))],
        out_specs=pl.BlockSpec((2, bb), lambda i: (0, i)),
        compiler_params=pltpu.CompilerParams(dimension_semantics=("parallel",)),
        cost_estimate=cost,
    )(zt)

    return out[0, :B], out[1, :B]


def loe_dcl(z, temperature=0.1, block_b=2048):
    """Pallas LOEDCL.forward. z: (B, T, D), any float dtype. Returns (loss_n, loss_a)."""
    B, T, D = z.shape
    # Layout plumbing only: put batch on the 128-wide lane axis.  This is an
    # HBM->HBM relayout done by XLA before the kernel; producers that can hand
    # (T, D, B) (ideally bf16) should call loe_dcl_tdb() and skip it entirely.
    zt = jnp.transpose(z, (1, 2, 0))
    return loe_dcl_tdb(zt, B, temperature=temperature, block_b=block_b)


def loe_dcl_ref(z, temperature=0.1):
    """Pure-JAX f32 reference mirroring the PyTorch forward."""
    z = z.astype(jnp.float32)
    zn = z / jnp.maximum(jnp.linalg.norm(z, axis=-1, keepdims=True), 1e-12)
    B, T, D = z.shape
    sim = jnp.exp(jnp.einsum("btd,bsd->bts", zn, zn) / temperature)
    eye = jnp.eye(T, dtype=zn.dtype)
    trans = jnp.sum(sim * (1.0 - eye)[None], axis=-1)[:, 1:]
    pos = jnp.exp(jnp.sum(zn[:, 1:] * zn[:, 0:1], axis=-1) / temperature)
    K = T - 1
    scale = 1.0 / abs(math.log(1.0 / K))
    loss_n = ((jnp.log(trans) - jnp.log(pos)) * scale).mean(1)
    loss_a = (-jnp.log(1.0 - pos / trans) * scale).mean(1)
    return loss_n, loss_a


if __name__ == "__main__":
    key = jax.random.PRNGKey(0)
    T, D = 8, 32  # num_trans, z_dim

    # (B, block_b, dtype): multi-step "parallel" grid; tiny-batch padding path;
    # bf16 HBM path (kernel upcasts to f32 internally).
    cases = [(256, 128, jnp.float32), (2, 2048, jnp.float32), (384, 2048, jnp.bfloat16)]
    for B, blk, dtype in cases:
        z = jax.random.normal(jax.random.fold_in(key, B), (B, T, D), dtype=jnp.float32)
        zin = z.astype(dtype)

        loss_n, loss_a = loe_dcl(zin, temperature=0.1, block_b=blk)
        loss_n = jax.block_until_ready(loss_n)
        loss_a = jax.block_until_ready(loss_a)

        ref_n, ref_a = loe_dcl_ref(zin, temperature=0.1)
        assert np.allclose(np.asarray(loss_n), np.asarray(ref_n), rtol=2e-4, atol=2e-4), (B, dtype)
        assert np.allclose(np.asarray(loss_a), np.asarray(ref_a), rtol=2e-4, atol=2e-4), (B, dtype)

    print("KERNEL_OK")
</pallas_src>

<mosaic_0001>
module attributes {stable_mosaic.version = 11 : i64} {
  func.func @_loe_dcl_kernel(%arg0: i32, %arg1: memref<8x32x128xf32, #tpu.memory_space<vmem>>, %arg2: memref<2x128xf32, #tpu.memory_space<vmem>>) attributes {dimension_semantics = [#tpu.dimension_semantics<parallel>], iteration_bounds = array<i64: 2>, scalar_prefetch = 0 : i64, scratch_operands = 0 : i64, tpu.core_type = #tpu.core_type<tc>, window_params = [{transform_indices = @transform_0, window_bounds = array<i64: 8, 32, 128>}, {transform_indices = @transform_1, window_bounds = array<i64: 2, 128>}]} {
    %c0 = arith.constant 0 : index
    %c0_0 = arith.constant 0 : index
    %c0_1 = arith.constant 0 : index
    %0 = vector.load %arg1[%c0, %c0_0, %c0_1] : memref<8x32x128xf32, #tpu.memory_space<vmem>>, vector<8x32x128xf32>
    %1 = arith.mulf %0, %0 : vector<8x32x128xf32>
    %cst = arith.constant dense<0.000000e+00> : vector<8x128xf32>
    %2 = vector.multi_reduction <add>, %1, %cst [1] : vector<8x32x128xf32> to vector<8x128xf32>
    %cst_2 = arith.constant 1.000000e-24 : f32
    %3 = vector.broadcast %cst_2 : f32 to vector<8x128xf32>
    %4 = arith.maximumf %2, %3 : vector<8x128xf32>
    %5 = math.rsqrt %4 : vector<8x128xf32>
    %cst_3 = arith.constant 3.1622777 : f32
    %6 = vector.broadcast %cst_3 : f32 to vector<8x128xf32>
    %7 = arith.mulf %5, %6 : vector<8x128xf32>
    %8 = vector.extract_strided_slice %0 {offsets = [1, 0, 0], sizes = [1, 32, 128], strides = [1, 1, 1]} : vector<8x32x128xf32> to vector<1x32x128xf32>
    %9 = vector.shape_cast %8 : vector<1x32x128xf32> to vector<32x128xf32>
    %10 = vector.extract_strided_slice %0 {offsets = [0, 0, 0], sizes = [1, 32, 128], strides = [1, 1, 1]} : vector<8x32x128xf32> to vector<1x32x128xf32>
    %11 = vector.shape_cast %10 : vector<1x32x128xf32> to vector<32x128xf32>
    %12 = arith.mulf %9, %11 : vector<32x128xf32>
    %cst_4 = arith.constant dense<0.000000e+00> : vector<128xf32>
    %13 = vector.multi_reduction <add>, %12, %cst_4 [0] : vector<32x128xf32> to vector<128xf32>
    %14 = vector.shape_cast %13 : vector<128xf32> to vector<1x128xf32>
    %15 = vector.extract_strided_slice %7 {offsets = [1, 0], sizes = [1, 128], strides = [1, 1]} : vector<8x128xf32> to vector<1x128xf32>
    %16 = vector.extract_strided_slice %7 {offsets = [0, 0], sizes = [1, 128], strides = [1, 1]} : vector<8x128xf32> to vector<1x128xf32>
    %17 = arith.mulf %15, %16 : vector<1x128xf32>
    %18 = arith.mulf %14, %17 : vector<1x128xf32>
    %19 = vector.extract_strided_slice %0 {offsets = [2, 0, 0], sizes = [1, 32, 128], strides = [1, 1, 1]} : vector<8x32x128xf32> to vector<1x32x128xf32>
    %20 = vector.shape_cast %19 : vector<1x32x128xf32> to vector<32x128xf32>
    %21 = vector.extract_strided_slice %0 {offsets = [0, 0, 0], sizes = [1, 32, 128], strides = [1, 1, 1]} : vector<8x32x128xf32> to vector<1x32x128xf32>
    %22 = vector.shape_cast %21 : vector<1x32x128xf32> to vector<32x128xf32>
    %23 = arith.mulf %20, %22 : vector<32x128xf32>
    %cst_5 = arith.constant dense<0.000000e+00> : vector<128xf32>
    %24 = vector.multi_reduction <add>, %23, %cst_5 [0] : vector<32x128xf32> to vector<128xf32>
    %25 = vector.shape_cast %24 : vector<128xf32> to vector<1x128xf32>
    %26 = vector.extract_strided_slice %7 {offsets = [2, 0], sizes = [1, 128], strides = [1, 1]} : vector<8x128xf32> to vector<1x128xf32>
    %27 = vector.extract_strided_slice %7 {offsets = [0, 0], sizes = [1, 128], strides = [1, 1]} : vector<8x128xf32> to vector<1x128xf32>
    %28 = arith.mulf %26, %27 : vector<1x128xf32>
    %29 = arith.mulf %25, %28 : vector<1x128xf32>
    %30 = vector.extract_strided_slice %0 {offsets = [3, 0, 0], sizes = [1, 32, 128], strides = [1, 1, 1]} : vector<8x32x128xf32> to vector<1x32x128xf32>
    %31 = vector.shape_cast %30 : vector<1x32x128xf32> to vector<32x128xf32>
    %32 = vector.extract_strided_slice %0 {offsets = [0, 0, 0], sizes = [1, 32, 128], strides = [1, 1, 1]} : vector<8x32x128xf32> to vector<1x32x128xf32>
    %33 = vector.shape_cast %32 : vector<1x32x128xf32> to vector<32x128xf32>
    %34 = arith.mulf %31, %33 : vector<32x128xf32>
    %cst_6 = arith.constant dense<0.000000e+00> : vector<128xf32>
    %35 = vector.multi_reduction <add>, %34, %cst_6 [0] : vector<32x128xf32> to vector<128xf32>
    %36 = vector.shape_cast %35 : vector<128xf32> to vector<1x128xf32>
    %37 = vector.extract_strided_slice %7 {offsets = [3, 0], sizes = [1, 128], strides = [1, 1]} : vector<8x128xf32> to vector<1x128xf32>
    %38 = vector.extract_strided_slice %7 {offsets = [0, 0], sizes = [1, 128], strides = [1, 1]} : vector<8x128xf32> to vector<1x128xf32>
    %39 = arith.mulf %37, %38 : vector<1x128xf32>
    %40 = arith.mulf %36, %39 : vector<1x128xf32>
    %41 = vector.extract_strided_slice %0 {offsets = [4, 0, 0], sizes = [1, 32, 128], strides = [1, 1, 1]} : vector<8x32x128xf32> to vector<1x32x128xf32>
    %42 = vector.shape_cast %41 : vector<1x32x128xf32> to vector<32x128xf32>
    %43 = vector.extract_strided_slice %0 {offsets = [0, 0, 0], sizes = [1, 32, 128], strides = [1, 1, 1]} : vector<8x32x128xf32> to vector<1x32x128xf32>
    %44 = vector.shape_cast %43 : vector<1x32x128xf32> to vector<32x128xf32>
    %45 = arith.mulf %42, %44 : vector<32x128xf32>
    %cst_7 = arith.constant dense<0.000000e+00> : vector<128xf32>
    %46 = vector.multi_reduction <add>, %45, %cst_7 [0] : vector<32x128xf32> to vector<128xf32>
    %47 = vector.shape_cast %46 : vector<128xf32> to vector<1x128xf32>
    %48 = vector.extract_strided_slice %7 {offsets = [4, 0], sizes = [1, 128], strides = [1, 1]} : vector<8x128xf32> to vector<1x128xf32>
    %49 = vector.extract_strided_slice %7 {offsets = [0, 0], sizes = [1, 128], strides = [1, 1]} : vector<8x128xf32> to vector<1x128xf32>
    %50 = arith.mulf %48, %49 : vector<1x128xf32>
    %51 = arith.mulf %47, %50 : vector<1x128xf32>
    %52 = vector.extract_strided_slice %0 {offsets = [5, 0, 0], sizes = [1, 32, 128], strides = [1, 1, 1]} : vector<8x32x128xf32> to vector<1x32x128xf32>
    %53 = vector.shape_cast %52 : vector<1x32x128xf32> to vector<32x128xf32>
    %54 = vector.extract_strided_slice %0 {offsets = [0, 0, 0], sizes = [1, 32, 128], strides = [1, 1, 1]} : vector<8x32x128xf32> to vector<1x32x128xf32>
    %55 = vector.shape_cast %54 : vector<1x32x128xf32> to vector<32x128xf32>
    %56 = arith.mulf %53, %55 : vector<32x128xf32>
    %cst_8 = arith.constant dense<0.000000e+00> : vector<128xf32>
    %57 = vector.multi_reduction <add>, %56, %cst_8 [0] : vector<32x128xf32> to vector<128xf32>
    %58 = vector.shape_cast %57 : vector<128xf32> to vector<1x128xf32>
    %59 = vector.extract_strided_slice %7 {offsets = [5, 0], sizes = [1, 128], strides = [1, 1]} : vector<8x128xf32> to vector<1x128xf32>
    %60 = vector.extract_strided_slice %7 {offsets = [0, 0], sizes = [1, 128], strides = [1, 1]} : vector<8x128xf32> to vector<1x128xf32>
    %61 = arith.mulf %59, %60 : vector<1x128xf32>
    %62 = arith.mulf %58, %61 : vector<1x128xf32>
    %63 = vector.extract_strided_slice %0 {offsets = [6, 0, 0], sizes = [1, 32, 128], strides = [1, 1, 1]} : vector<8x32x128xf32> to vector<1x32x128xf32>
    %64 = vector.shape_cast %63 : vector<1x32x128xf32> to vector<32x128xf32>
    %65 = vector.extract_strided_slice %0 {offsets = [0, 0, 0], sizes = [1, 32, 128], strides = [1, 1, 1]} : vector<8x32x128xf32> to vector<1x32x128xf32>
    %66 = vector.shape_cast %65 : vector<1x32x128xf32> to vector<32x128xf32>
    %67 = arith.mulf %64, %66 : vector<32x128xf32>
    %cst_9 = arith.constant dense<0.000000e+00> : vector<128xf32>
    %68 = vector.multi_reduction <add>, %67, %cst_9 [0] : vector<32x128xf32> to vector<128xf32>
    %69 = vector.shape_cast %68 : vector<128xf32> to vector<1x128xf32>
    %70 = vector.extract_strided_slice %7 {offsets = [6, 0], sizes = [1, 128], strides = [1, 1]} : vector<8x128xf32> to vector<1x128xf32>
    %71 = vector.extract_strided_slice %7 {offsets = [0, 0], sizes = [1, 128], strides = [1, 1]} : vector<8x128xf32> to vector<1x128xf32>
    %72 = arith.mulf %70, %71 : vector<1x128xf32>
    %73 = arith.mulf %69, %72 : vector<1x128xf32>
    %74 = vector.extract_strided_slice %0 {offsets = [7, 0, 0], sizes = [1, 32, 128], strides = [1, 1, 1]} : vector<8x32x128xf32> to vector<1x32x128xf32>
    %75 = vector.shape_cast %74 : vector<1x32x128xf32> to vector<32x128xf32>
    %76 = vector.extract_strided_slice %0 {offsets = [0, 0, 0], sizes = [1, 32, 128], strides = [1, 1, 1]} : vector<8x32x128xf32> to vector<1x32x128xf32>
    %77 = vector.shape_cast %76 : vector<1x32x128xf32> to vector<32x128xf32>
    %78 = arith.mulf %75, %77 : vector<32x128xf32>
    %cst_10 = arith.constant dense<0.000000e+00> : vector<128xf32>
    %79 = vector.multi_reduction <add>, %78, %cst_10 [0] : vector<32x128xf32> to vector<128xf32>
    %80 = vector.shape_cast %79 : vector<128xf32> to vector<1x128xf32>
    %81 = vector.extract_strided_slice %7 {offsets = [7, 0], sizes = [1, 128], strides = [1, 1]} : vector<8x128xf32> to vector<1x128xf32>
    %82 = vector.extract_strided_slice %7 {offsets = [0, 0], sizes = [1, 128], strides = [1, 1]} : vector<8x128xf32> to vector<1x128xf32>
    %83 = arith.mulf %81, %82 : vector<1x128xf32>
    %84 = arith.mulf %80, %83 : vector<1x128xf32>
    %85 = math.exp %18 : vector<1x128xf32>
    %86 = math.exp %29 : vector<1x128xf32>
    %87 = math.exp %40 : vector<1x128xf32>
    %88 = math.exp %51 : vector<1x128xf32>
    %89 = math.exp %62 : vector<1x128xf32>
    %90 = math.exp %73 : vector<1x128xf32>
    %91 = math.exp %84 : vector<1x128xf32>
    %cst_11 = arith.constant 0.000000e+00 : f32
    %92 = vector.broadcast %cst_11 : f32 to vector<1x128xf32>
    %cst_12 = arith.constant 0.000000e+00 : f32
    %93 = vector.broadcast %cst_12 : f32 to vector<1x128xf32>
    %cst_13 = arith.constant 0.000000e+00 : f32
    %94 = vector.broadcast %cst_13 : f32 to vector<1x128xf32>
    %cst_14 = arith.constant 0.000000e+00 : f32
    %95 = vector.broadcast %cst_14 : f32 to vector<1x128xf32>
    %cst_15 = arith.constant 0.000000e+00 : f32
    %96 = vector.broadcast %cst_15 : f32 to vector<1x128xf32>
    %cst_16 = arith.constant 0.000000e+00 : f32
    %97 = vector.broadcast %cst_16 : f32 to vector<1x128xf32>
    %cst_17 = arith.constant 0.000000e+00 : f32
    %98 = vector.broadcast %cst_17 : f32 to vector<1x128xf32>
    %99 = vector.extract_strided_slice %0 {offsets = [2, 0, 0], sizes = [1, 32, 128], strides = [1, 1, 1]} : vector<8x32x128xf32> to vector<1x32x128xf32>
    %100 = vector.shape_cast %99 : vector<1x32x128xf32> to vector<32x128xf32>
    %101 = vector.extract_strided_slice %0 {offsets = [1, 0, 0], sizes = [1, 32, 128], strides = [1, 1, 1]} : vector<8x32x128xf32> to vector<1x32x128xf32>
    %102 = vector.shape_cast %101 : vector<1x32x128xf32> to vector<32x128xf32>
    %103 = arith.mulf %100, %102 : vector<32x128xf32>
    %cst_18 = arith.constant dense<0.000000e+00> : vector<128xf32>
    %104 = vector.multi_reduction <add>, %103, %cst_18 [0] : vector<32x128xf32> to vector<128xf32>
    %105 = vector.shape_cast %104 : vector<128xf32> to vector<1x128xf32>
    %106 = vector.extract_strided_slice %7 {offsets = [2, 0], sizes = [1, 128], strides = [1, 1]} : vector<8x128xf32> to vector<1x128xf32>
    %107 = vector.extract_strided_slice %7 {offsets = [1, 0], sizes = [1, 128], strides = [1, 1]} : vector<8x128xf32> to vector<1x128xf32>
    %108 = arith.mulf %106, %107 : vector<1x128xf32>
    %109 = arith.mulf %105, %108 : vector<1x128xf32>
    %110 = math.exp %109 : vector<1x128xf32>
    %111 = arith.addf %93, %110 : vector<1x128xf32>
    %112 = arith.addf %92, %110 : vector<1x128xf32>
    %113 = vector.extract_strided_slice %0 {offsets = [3, 0, 0], sizes = [1, 32, 128], strides = [1, 1, 1]} : vector<8x32x128xf32> to vector<1x32x128xf32>
    %114 = vector.shape_cast %113 : vector<1x32x128xf32> to vector<32x128xf32>
    %115 = vector.extract_strided_slice %0 {offsets = [1, 0, 0], sizes = [1, 32, 128], strides = [1, 1, 1]} : vector<8x32x128xf32> to vector<1x32x128xf32>
    %116 = vector.shape_cast %115 : vector<1x32x128xf32> to vector<32x128xf32>
    %117 = arith.mulf %114, %116 : vector<32x128xf32>
    %cst_19 = arith.constant dense<0.000000e+00> : vector<128xf32>
    %118 = vector.multi_reduction <add>, %117, %cst_19 [0] : vector<32x128xf32> to vector<128xf32>
    %119 = vector.shape_cast %118 : vector<128xf32> to vector<1x128xf32>
    %120 = vector.extract_strided_slice %7 {offsets = [3, 0], sizes = [1, 128], strides = [1, 1]} : vector<8x128xf32> to vector<1x128xf32>
    %121 = vector.extract_strided_slice %7 {offsets = [1, 0], sizes = [1, 128], strides = [1, 1]} : vector<8x128xf32> to vector<1x128xf32>
    %122 = arith.mulf %120, %121 : vector<1x128xf32>
    %123 = arith.mulf %119, %122 : vector<1x128xf32>
    %124 = math.exp %123 : vector<1x128xf32>
    %125 = arith.addf %94, %124 : vector<1x128xf32>
    %126 = arith.addf %112, %124 : vector<1x128xf32>
    %127 = vector.extract_strided_slice %0 {offsets = [3, 0, 0], sizes = [1, 32, 128], strides = [1, 1, 1]} : vector<8x32x128xf32> to vector<1x32x128xf32>
    %128 = vector.shape_cast %127 : vector<1x32x128xf32> to vector<32x128xf32>
    %129 = vector.extract_strided_slice %0 {offsets = [2, 0, 0], sizes = [1, 32, 128], strides = [1, 1, 1]} : vector<8x32x128xf32> to vector<1x32x128xf32>
    %130 = vector.shape_cast %129 : vector<1x32x128xf32> to vector<32x128xf32>
    %131 = arith.mulf %128, %130 : vector<32x128xf32>
    %cst_20 = arith.constant dense<0.000000e+00> : vector<128xf32>
    %132 = vector.multi_reduction <add>, %131, %cst_20 [0] : vector<32x128xf32> to vector<128xf32>
    %133 = vector.shape_cast %132 : vector<128xf32> to vector<1x128xf32>
    %134 = vector.extract_strided_slice %7 {offsets = [3, 0], sizes = [1, 128], strides = [1, 1]} : vector<8x128xf32> to vector<1x128xf32>
    %135 = vector.extract_strided_slice %7 {offsets = [2, 0], sizes = [1, 128], strides = [1, 1]} : vector<8x128xf32> to vector<1x128xf32>
    %136 = arith.mulf %134, %135 : vector<1x128xf32>
    %137 = arith.mulf %133, %136 : vector<1x128xf32>
    %138 = math.exp %137 : vector<1x128xf32>
    %139 = arith.addf %125, %138 : vector<1x128xf32>
    %140 = arith.addf %111, %138 : vector<1x128xf32>
    %141 = vector.extract_strided_slice %0 {offsets = [4, 0, 0], sizes = [1, 32, 128], strides = [1, 1, 1]} : vector<8x32x128xf32> to vector<1x32x128xf32>
    %142 = vector.shape_cast %141 : vector<1x32x128xf32> to vector<32x128xf32>
    %143 = vector.extract_strided_slice %0 {offsets = [1, 0, 0], sizes = [1, 32, 128], strides = [1, 1, 1]} : vector<8x32x128xf32> to vector<1x32x128xf32>
    %144 = vector.shape_cast %143 : vector<1x32x128xf32> to vector<32x128xf32>
    %145 = arith.mulf %142, %144 : vector<32x128xf32>
    %cst_21 = arith.constant dense<0.000000e+00> : vector<128xf32>
    %146 = vector.multi_reduction <add>, %145, %cst_21 [0] : vector<32x128xf32> to vector<128xf32>
    %147 = vector.shape_cast %146 : vector<128xf32> to vector<1x128xf32>
    %148 = vector.extract_strided_slice %7 {offsets = [4, 0], sizes = [1, 128], strides = [1, 1]} : vector<8x128xf32> to vector<1x128xf32>
    %149 = vector.extract_strided_slice %7 {offsets = [1, 0], sizes = [1, 128], strides = [1, 1]} : vector<8x128xf32> to vector<1x128xf32>
    %150 = arith.mulf %148, %149 : vector<1x128xf32>
    %151 = arith.mulf %147, %150 : vector<1x128xf32>
    %152 = math.exp %151 : vector<1x128xf32>
    %153 = arith.addf %95, %152 : vector<1x128xf32>
    %154 = arith.addf %126, %152 : vector<1x128xf32>
    %155 = vector.extract_strided_slice %0 {offsets = [4, 0, 0], sizes = [1, 32, 128], strides = [1, 1, 1]} : vector<8x32x128xf32> to vector<1x32x128xf32>
    %156 = vector.shape_cast %155 : vector<1x32x128xf32> to vector<32x128xf32>
    %157 = vector.extract_strided_slice %0 {offsets = [2, 0, 0], sizes = [1, 32, 128], strides = [1, 1, 1]} : vector<8x32x128xf32> to vector<1x32x128xf32>
    %158 = vector.shape_cast %157 : vector<1x32x128xf32> to vector<32x128xf32>
    %159 = arith.mulf %156, %158 : vector<32x128xf32>
    %cst_22 = arith.constant dense<0.000000e+00> : vector<128xf32>
    %160 = vector.multi_reduction <add>, %159, %cst_22 [0] : vector<32x128xf32> to vector<128xf32>
    %161 = vector.shape_cast %160 : vector<128xf32> to vector<1x128xf32>
    %162 = vector.extract_strided_slice %7 {offsets = [4, 0], sizes = [1, 128], strides = [1, 1]} : vector<8x128xf32> to vector<1x128xf32>
    %163 = vector.extract_strided_slice %7 {offsets = [2, 0], sizes = [1, 128], strides = [1, 1]} : vector<8x128xf32> to vector<1x128xf32>
    %164 = arith.mulf %162, %163 : vector<1x128xf32>
    %165 = arith.mulf %161, %164 : vector<1x128xf32>
    %166 = math.exp %165 : vector<1x128xf32>
    %167 = arith.addf %153, %166 : vector<1x128xf32>
    %168 = arith.addf %140, %166 : vector<1x128xf32>
    %169 = vector.extract_strided_slice %0 {offsets = [4, 0, 0], sizes = [1, 32, 128], strides = [1, 1, 1]} : vector<8x32x128xf32> to vector<1x32x128xf32>
    %170 = vector.shape_cast %169 : vector<1x32x128xf32> to vector<32x128xf32>
    %171 = vector.extract_strided_slice %0 {offsets = [3, 0, 0], sizes = [1, 32, 128], strides = [1, 1, 1]} : vector<8x32x128xf32> to vector<1x32x128xf32>
    %172 = vector.shape_cast %171 : vector<1x32x128xf32> to vector<32x128xf32>
    %173 = arith.mulf %170, %172 : vector<32x128xf32>
    %cst_23 = arith.constant dense<0.000000e+00> : vector<128xf32>
    %174 = vector.multi_reduction <add>, %173, %cst_23 [0] : vector<32x128xf32> to vector<128xf32>
    %175 = vector.shape_cast %174 : vector<128xf32> to vector<1x128xf32>
    %176 = vector.extract_strided_slice %7 {offsets = [4, 0], sizes = [1, 128], strides = [1, 1]} : vector<8x128xf32> to vector<1x128xf32>
    %177 = vector.extract_strided_slice %7 {offsets = [3, 0], sizes = [1, 128], strides = [1, 1]} : vector<8x128xf32> to vector<1x128xf32>
    %178 = arith.mulf %176, %177 : vector<1x128xf32>
    %179 = arith.mulf %175, %178 : vector<1x128xf32>
    %180 = math.exp %179 : vector<1x128xf32>
    %181 = arith.addf %167, %180 : vector<1x128xf32>
    %182 = arith.addf %139, %180 : vector<1x128xf32>
    %183 = vector.extract_strided_slice %0 {offsets = [5, 0, 0], sizes = [1, 32, 128], strides = [1, 1, 1]} : vector<8x32x128xf32> to vector<1x32x128xf32>
    %184 = vector.shape_cast %183 : vector<1x32x128xf32> to vector<32x128xf32>
    %185 = vector.extract_strided_slice %0 {offsets = [1, 0, 0], sizes = [1, 32, 128], strides = [1, 1, 1]} : vector<8x32x128xf32> to vector<1x32x128xf32>
    %186 = vector.shape_cast %185 : vector<1x32x128xf32> to vector<32x128xf32>
    %187 = arith.mulf %184, %186 : vector<32x128xf32>
    %cst_24 = arith.constant dense<0.000000e+00> : vector<128xf32>
    %188 = vector.multi_reduction <add>, %187, %cst_24 [0] : vector<32x128xf32> to vector<128xf32>
    %189 = vector.shape_cast %188 : vector<128xf32> to vector<1x128xf32>
    %190 = vector.extract_strided_slice %7 {offsets = [5, 0], sizes = [1, 128], strides = [1, 1]} : vector<8x128xf32> to vector<1x128xf32>
    %191 = vector.extract_strided_slice %7 {offsets = [1, 0], sizes = [1, 128], strides = [1, 1]} : vector<8x128xf32> to vector<1x128xf32>
    %192 = arith.mulf %190, %191 : vector<1x128xf32>
    %193 = arith.mulf %189, %192 : vector<1x128xf32>
    %194 = math.exp %193 : vector<1x128xf32>
    %195 = arith.addf %96, %194 : vector<1x128xf32>
    %196 = arith.addf %154, %194 : vector<1x128xf32>
    %197 = vector.extract_strided_slice %0 {offsets = [5, 0, 0], sizes = [1, 32, 128], strides = [1, 1, 1]} : vector<8x32x128xf32> to vector<1x32x128xf32>
    %198 = vector.shape_cast %197 : vector<1x32x128xf32> to vector<32x128xf32>
    %199 = vector.extract_strided_slice %0 {offsets = [2, 0, 0], sizes = [1, 32, 128], strides = [1, 1, 1]} : vector<8x32x128xf32> to vector<1x32x128xf32>
    %200 = vector.shape_cast %199 : vector<1x32x128xf32> to vector<32x128xf32>
    %201 = arith.mulf %198, %200 : vector<32x128xf32>
    %cst_25 = arith.constant dense<0.000000e+00> : vector<128xf32>
    %202 = vector.multi_reduction <add>, %201, %cst_25 [0] : vector<32x128xf32> to vector<128xf32>
    %203 = vector.shape_cast %202 : vector<128xf32> to vector<1x128xf32>
    %204 = vector.extract_strided_slice %7 {offsets = [5, 0], sizes = [1, 128], strides = [1, 1]} : vector<8x128xf32> to vector<1x128xf32>
    %205 = vector.extract_strided_slice %7 {offsets = [2, 0], sizes = [1, 128], strides = [1, 1]} : vector<8x128xf32> to vector<1x128xf32>
    %206 = arith.mulf %204, %205 : vector<1x128xf32>
    %207 = arith.mulf %203, %206 : vector<1x128xf32>
    %208 = math.exp %207 : vector<1x128xf32>
    %209 = arith.addf %195, %208 : vector<1x128xf32>
    %210 = arith.addf %168, %208 : vector<1x128xf32>
    %211 = vector.extract_strided_slice %0 {offsets = [5, 0, 0], sizes = [1, 32, 128], strides = [1, 1, 1]} : vector<8x32x128xf32> to vector<1x32x128xf32>
    %212 = vector.shape_cast %211 : vector<1x32x128xf32> to vector<32x128xf32>
    %213 = vector.extract_strided_slice %0 {offsets = [3, 0, 0], sizes = [1, 32, 128], strides = [1, 1, 1]} : vector<8x32x128xf32> to vector<1x32x128xf32>
    %214 = vector.shape_cast %213 : vector<1x32x128xf32> to vector<32x128xf32>
    %215 = arith.mulf %212, %214 : vector<32x128xf32>
    %cst_26 = arith.constant dense<0.000000e+00> : vector<128xf32>
    %216 = vector.multi_reduction <add>, %215, %cst_26 [0] : vector<32x128xf32> to vector<128xf32>
    %217 = vector.shape_cast %216 : vector<128xf32> to vector<1x128xf32>
    %218 = vector.extract_strided_slice %7 {offsets = [5, 0], sizes = [1, 128], strides = [1, 1]} : vector<8x128xf32> to vector<1x128xf32>
    %219 = vector.extract_strided_slice %7 {offsets = [3, 0], sizes = [1, 128], strides = [1, 1]} : vector<8x128xf32> to vector<1x128xf32>
    %220 = arith.mulf %218, %219 : vector<1x128xf32>
    %221 = arith.mulf %217, %220 : vector<1x128xf32>
    %222 = math.exp %221 : vector<1x128xf32>
    %223 = arith.addf %209, %222 : vector<1x128xf32>
    %224 = arith.addf %182, %222 : vector<1x128xf32>
    %225 = vector.extract_strided_slice %0 {offsets = [5, 0, 0], sizes = [1, 32, 128], strides = [1, 1, 1]} : vector<8x32x128xf32> to vector<1x32x128xf32>
    %226 = vector.shape_cast %225 : vector<1x32x128xf32> to vector<32x128xf32>
    %227 = vector.extract_strided_slice %0 {offsets = [4, 0, 0], sizes = [1, 32, 128], strides = [1, 1, 1]} : vector<8x32x128xf32> to vector<1x32x128xf32>
    %228 = vector.shape_cast %227 : vector<1x32x128xf32> to vector<32x128xf32>
    %229 = arith.mulf %226, %228 : vector<32x128xf32>
    %cst_27 = arith.constant dense<0.000000e+00> : vector<128xf32>
    %230 = vector.multi_reduction <add>, %229, %cst_27 [0] : vector<32x128xf32> to vector<128xf32>
    %231 = vector.shape_cast %230 : vector<128xf32> to vector<1x128xf32>
    %232 = vector.extract_strided_slice %7 {offsets = [5, 0], sizes = [1, 128], strides = [1, 1]} : vector<8x128xf32> to vector<1x128xf32>
    %233 = vector.extract_strided_slice %7 {offsets = [4, 0], sizes = [1, 128], strides = [1, 1]} : vector<8x128xf32> to vector<1x128xf32>
    %234 = arith.mulf %232, %233 : vector<1x128xf32>
    %235 = arith.mulf %231, %234 : vector<1x128xf32>
    %236 = math.exp %235 : vector<1x128xf32>
    %237 = arith.addf %223, %236 : vector<1x128xf32>
    %238 = arith.addf %181, %236 : vector<1x128xf32>
    %239 = vector.extract_strided_slice %0 {offsets = [6, 0, 0], sizes = [1, 32, 128], strides = [1, 1, 1]} : vector<8x32x128xf32> to vector<1x32x128xf32>
    %240 = vector.shape_cast %239 : vector<1x32x128xf32> to vector<32x128xf32>
    %241 = vector.extract_strided_slice %0 {offsets = [1, 0, 0], sizes = [1, 32, 128], strides = [1, 1, 1]} : vector<8x32x128xf32> to vector<1x32x128xf32>
    %242 = vector.shape_cast %241 : vector<1x32x128xf32> to vector<32x128xf32>
    %243 = arith.mulf %240, %242 : vector<32x128xf32>
    %cst_28 = arith.constant dense<0.000000e+00> : vector<128xf32>
    %244 = vector.multi_reduction <add>, %243, %cst_28 [0] : vector<32x128xf32> to vector<128xf32>
    %245 = vector.shape_cast %244 : vector<128xf32> to vector<1x128xf32>
    %246 = vector.extract_strided_slice %7 {offsets = [6, 0], sizes = [1, 128], strides = [1, 1]} : vector<8x128xf32> to vector<1x128xf32>
    %247 = vector.extract_strided_slice %7 {offsets = [1, 0], sizes = [1, 128], strides = [1, 1]} : vector<8x128xf32> to vector<1x128xf32>
    %248 = arith.mulf %246, %247 : vector<1x128xf32>
    %249 = arith.mulf %245, %248 : vector<1x128xf32>
    %250 = math.exp %249 : vector<1x128xf32>
    %251 = arith.addf %97, %250 : vector<1x128xf32>
    %252 = arith.addf %196, %250 : vector<1x128xf32>
    %253 = vector.extract_strided_slice %0 {offsets = [6, 0, 0], sizes = [1, 32, 128], strides = [1, 1, 1]} : vector<8x32x128xf32> to vector<1x32x128xf32>
    %254 = vector.shape_cast %253 : vector<1x32x128xf32> to vector<32x128xf32>
    %255 = vector.extract_strided_slice %0 {offsets = [2, 0, 0], sizes = [1, 32, 128], strides = [1, 1, 1]} : vector<8x32x128xf32> to vector<1x32x128xf32>
    %256 = vector.shape_cast %255 : vector<1x32x128xf32> to vector<32x128xf32>
    %257 = arith.mulf %254, %256 : vector<32x128xf32>
    %cst_29 = arith.constant dense<0.000000e+00> : vector<128xf32>
    %258 = vector.multi_reduction <add>, %257, %cst_29 [0] : vector<32x128xf32> to vector<128xf32>
    %259 = vector.shape_cast %258 : vector<128xf32> to vector<1x128xf32>
    %260 = vector.extract_strided_slice %7 {offsets = [6, 0], sizes = [1, 128], strides = [1, 1]} : vector<8x128xf32> to vector<1x128xf32>
    %261 = vector.extract_strided_slice %7 {offsets = [2, 0], sizes = [1, 128], strides = [1, 1]} : vector<8x128xf32> to vector<1x128xf32>
    %262 = arith.mulf %260, %261 : vector<1x128xf32>
    %263 = arith.mulf %259, %262 : vector<1x128xf32>
    %264 = math.exp %263 : vector<1x128xf32>
    %265 = arith.addf %251, %264 : vector<1x128xf32>
    %266 = arith.addf %210, %264 : vector<1x128xf32>
    %267 = vector.extract_strided_slice %0 {offsets = [6, 0, 0], sizes = [1, 32, 128], strides = [1, 1, 1]} : vector<8x32x128xf32> to vector<1x32x128xf32>
    %268 = vector.shape_cast %267 : vector<1x32x128xf32> to vector<32x128xf32>
    %269 = vector.extract_strided_slice %0 {offsets = [3, 0, 0], sizes = [1, 32, 128], strides = [1, 1, 1]} : vector<8x32x128xf32> to vector<1x32x128xf32>
    %270 = vector.shape_cast %269 : vector<1x32x128xf32> to vector<32x128xf32>
    %271 = arith.mulf %268, %270 : vector<32x128xf32>
    %cst_30 = arith.constant dense<0.000000e+00> : vector<128xf32>
    %272 = vector.multi_reduction <add>, %271, %cst_30 [0] : vector<32x128xf32> to vector<128xf32>
    %273 = vector.shape_cast %272 : vector<128xf32> to vector<1x128xf32>
    %274 = vector.extract_strided_slice %7 {offsets = [6, 0], sizes = [1, 128], strides = [1, 1]} : vector<8x128xf32> to vector<1x128xf32>
    %275 = vector.extract_strided_slice %7 {offsets = [3, 0], sizes = [1, 128], strides = [1, 1]} : vector<8x128xf32> to vector<1x128xf32>
    %276 = arith.mulf %274, %275 : vector<1x128xf32>
    %277 = arith.mulf %273, %276 : vector<1x128xf32>
    %278 = math.exp %277 : vector<1x128xf32>
    %279 = arith.addf %265, %278 : vector<1x128xf32>
    %280 = arith.addf %224, %278 : vector<1x128xf32>
    %281 = vector.extract_strided_slice %0 {offsets = [6, 0, 0], sizes = [1, 32, 128], strides = [1, 1, 1]} : vector<8x32x128xf32> to vector<1x32x128xf32>
    %282 = vector.shape_cast %281 : vector<1x32x128xf32> to vector<32x128xf32>
    %283 = vector.extract_strided_slice %0 {offsets = [4, 0, 0], sizes = [1, 32, 128], strides = [1, 1, 1]} : vector<8x32x128xf32> to vector<1x32x128xf32>
    %284 = vector.shape_cast %283 : vector<1x32x128xf32> to vector<32x128xf32>
    %285 = arith.mulf %282, %284 : vector<32x128xf32>
    %cst_31 = arith.constant dense<0.000000e+00> : vector<128xf32>
    %286 = vector.multi_reduction <add>, %285, %cst_31 [0] : vector<32x128xf32> to vector<128xf32>
    %287 = vector.shape_cast %286 : vector<128xf32> to vector<1x128xf32>
    %288 = vector.extract_strided_slice %7 {offsets = [6, 0], sizes = [1, 128], strides = [1, 1]} : vector<8x128xf32> to vector<1x128xf32>
    %289 = vector.extract_strided_slice %7 {offsets = [4, 0], sizes = [1, 128], strides = [1, 1]} : vector<8x128xf32> to vector<1x128xf32>
    %290 = arith.mulf %288, %289 : vector<1x128xf32>
    %291 = arith.mulf %287, %290 : vector<1x128xf32>
    %292 = math.exp %291 : vector<1x128xf32>
    %293 = arith.addf %279, %292 : vector<1x128xf32>
    %294 = arith.addf %238, %292 : vector<1x128xf32>
    %295 = vector.extract_strided_slice %0 {offsets = [6, 0, 0], sizes = [1, 32, 128], strides = [1, 1, 1]} : vector<8x32x128xf32> to vector<1x32x128xf32>
    %296 = vector.shape_cast %295 : vector<1x32x128xf32> to vector<32x128xf32>
    %297 = vector.extract_strided_slice %0 {offsets = [5, 0, 0], sizes = [1, 32, 128], strides = [1, 1, 1]} : vector<8x32x128xf32> to vector<1x32x128xf32>
    %298 = vector.shape_cast %297 : vector<1x32x128xf32> to vector<32x128xf32>
    %299 = arith.mulf %296, %298 : vector<32x128xf32>
    %cst_32 = arith.constant dense<0.000000e+00> : vector<128xf32>
    %300 = vector.multi_reduction <add>, %299, %cst_32 [0] : vector<32x128xf32> to vector<128xf32>
    %301 = vector.shape_cast %300 : vector<128xf32> to vector<1x128xf32>
    %302 = vector.extract_strided_slice %7 {offsets = [6, 0], sizes = [1, 128], strides = [1, 1]} : vector<8x128xf32> to vector<1x128xf32>
    %303 = vector.extract_strided_slice %7 {offsets = [5, 0], sizes = [1, 128], strides = [1, 1]} : vector<8x128xf32> to vector<1x128xf32>
    %304 = arith.mulf %302, %303 : vector<1x128xf32>
    %305 = arith.mulf %301, %304 : vector<1x128xf32>
    %306 = math.exp %305 : vector<1x128xf32>
    %307 = arith.addf %293, %306 : vector<1x128xf32>
    %308 = arith.addf %237, %306 : vector<1x128xf32>
    %309 = vector.extract_strided_slice %0 {offsets = [7, 0, 0], sizes = [1, 32, 128], strides = [1, 1, 1]} : vector<8x32x128xf32> to vector<1x32x128xf32>
    %310 = vector.shape_cast %309 : vector<1x32x128xf32> to vector<32x128xf32>
    %311 = vector.extract_strided_slice %0 {offsets = [1, 0, 0], sizes = [1, 32, 128], strides = [1, 1, 1]} : vector<8x32x128xf32> to vector<1x32x128xf32>
    %312 = vector.shape_cast %311 : vector<1x32x128xf32> to vector<32x128xf32>
    %313 = arith.mulf %310, %312 : vector<32x128xf32>
    %cst_33 = arith.constant dense<0.000000e+00> : vector<128xf32>
    %314 = vector.multi_reduction <add>, %313, %cst_33 [0] : vector<32x128xf32> to vector<128xf32>
    %315 = vector.shape_cast %314 : vector<128xf32> to vector<1x128xf32>
    %316 = vector.extract_strided_slice %7 {offsets = [7, 0], sizes = [1, 128], strides = [1, 1]} : vector<8x128xf32> to vector<1x128xf32>
    %317 = vector.extract_strided_slice %7 {offsets = [1, 0], sizes = [1, 128], strides = [1, 1]} : vector<8x128xf32> to vector<1x128xf32>
    %318 = arith.mulf %316, %317 : vector<1x128xf32>
    %319 = arith.mulf %315, %318 : vector<1x128xf32>
    %320 = math.exp %319 : vector<1x128xf32>
    %321 = arith.addf %98, %320 : vector<1x128xf32>
    %322 = arith.addf %252, %320 : vector<1x128xf32>
    %323 = vector.extract_strided_slice %0 {offsets = [7, 0, 0], sizes = [1, 32, 128], strides = [1, 1, 1]} : vector<8x32x128xf32> to vector<1x32x128xf32>
    %324 = vector.shape_cast %323 : vector<1x32x128xf32> to vector<32x128xf32>
    %325 = vector.extract_strided_slice %0 {offsets = [2, 0, 0], sizes = [1, 32, 128], strides = [1, 1, 1]} : vector<8x32x128xf32> to vector<1x32x128xf32>
    %326 = vector.shape_cast %325 : vector<1x32x128xf32> to vector<32x128xf32>
    %327 = arith.mulf %324, %326 : vector<32x128xf32>
    %cst_34 = arith.constant dense<0.000000e+00> : vector<128xf32>
    %328 = vector.multi_reduction <add>, %327, %cst_34 [0] : vector<32x128xf32> to vector<128xf32>
    %329 = vector.shape_cast %328 : vector<128xf32> to vector<1x128xf32>
    %330 = vector.extract_strided_slice %7 {offsets = [7, 0], sizes = [1, 128], strides = [1, 1]} : vector<8x128xf32> to vector<1x128xf32>
    %331 = vector.extract_strided_slice %7 {offsets = [2, 0], sizes = [1, 128], strides = [1, 1]} : vector<8x128xf32> to vector<1x128xf32>
    %332 = arith.mulf %330, %331 : vector<1x128xf32>
    %333 = arith.mulf %329, %332 : vector<1x128xf32>
    %334 = math.exp %333 : vector<1x128xf32>
    %335 = arith.addf %321, %334 : vector<1x128xf32>
    %336 = arith.addf %266, %334 : vector<1x128xf32>
    %337 = vector.extract_strided_slice %0 {offsets = [7, 0, 0], sizes = [1, 32, 128], strides = [1, 1, 1]} : vector<8x32x128xf32> to vector<1x32x128xf32>
    %338 = vector.shape_cast %337 : vector<1x32x128xf32> to vector<32x128xf32>
    %339 = vector.extract_strided_slice %0 {offsets = [3, 0, 0], sizes = [1, 32, 128], strides = [1, 1, 1]} : vector<8x32x128xf32> to vector<1x32x128xf32>
    %340 = vector.shape_cast %339 : vector<1x32x128xf32> to vector<32x128xf32>
    %341 = arith.mulf %338, %340 : vector<32x128xf32>
    %cst_35 = arith.constant dense<0.000000e+00> : vector<128xf32>
    %342 = vector.multi_reduction <add>, %341, %cst_35 [0] : vector<32x128xf32> to vector<128xf32>
    %343 = vector.shape_cast %342 : vector<128xf32> to vector<1x128xf32>
    %344 = vector.extract_strided_slice %7 {offsets = [7, 0], sizes = [1, 128], strides = [1, 1]} : vector<8x128xf32> to vector<1x128xf32>
    %345 = vector.extract_strided_slice %7 {offsets = [3, 0], sizes = [1, 128], strides = [1, 1]} : vector<8x128xf32> to vector<1x128xf32>
    %346 = arith.mulf %344, %345 : vector<1x128xf32>
    %347 = arith.mulf %343, %346 : vector<1x128xf32>
    %348 = math.exp %347 : vector<1x128xf32>
    %349 = arith.addf %335, %348 : vector<1x128xf32>
    %350 = arith.addf %280, %348 : vector<1x128xf32>
    %351 = vector.extract_strided_slice %0 {offsets = [7, 0, 0], sizes = [1, 32, 128], strides = [1, 1, 1]} : vector<8x32x128xf32> to vector<1x32x128xf32>
    %352 = vector.shape_cast %351 : vector<1x32x128xf32> to vector<32x128xf32>
    %353 = vector.extract_strided_slice %0 {offsets = [4, 0, 0], sizes = [1, 32, 128], strides = [1, 1, 1]} : vector<8x32x128xf32> to vector<1x32x128xf32>
    %354 = vector.shape_cast %353 : vector<1x32x128xf32> to vector<32x128xf32>
    %355 = arith.mulf %352, %354 : vector<32x128xf32>
    %cst_36 = arith.constant dense<0.000000e+00> : vector<128xf32>
    %356 = vector.multi_reduction <add>, %355, %cst_36 [0] : vector<32x128xf32> to vector<128xf32>
    %357 = vector.shape_cast %356 : vector<128xf32> to vector<1x128xf32>
    %358 = vector.extract_strided_slice %7 {offsets = [7, 0], sizes = [1, 128], strides = [1, 1]} : vector<8x128xf32> to vector<1x128xf32>
    %359 = vector.extract_strided_slice %7 {offsets = [4, 0], sizes = [1, 128], strides = [1, 1]} : vector<8x128xf32> to vector<1x128xf32>
    %360 = arith.mulf %358, %359 : vector<1x128xf32>
    %361 = arith.mulf %357, %360 : vector<1x128xf32>
    %362 = math.exp %361 : vector<1x128xf32>
    %363 = arith.addf %349, %362 : vector<1x128xf32>
    %364 = arith.addf %294, %362 : vector<1x128xf32>
    %365 = vector.extract_strided_slice %0 {offsets = [7, 0, 0], sizes = [1, 32, 128], strides = [1, 1, 1]} : vector<8x32x128xf32> to vector<1x32x128xf32>
    %366 = vector.shape_cast %365 : vector<1x32x128xf32> to vector<32x128xf32>
    %367 = vector.extract_strided_slice %0 {offsets = [5, 0, 0], sizes = [1, 32, 128], strides = [1, 1, 1]} : vector<8x32x128xf32> to vector<1x32x128xf32>
    %368 = vector.shape_cast %367 : vector<1x32x128xf32> to vector<32x128xf32>
    %369 = arith.mulf %366, %368 : vector<32x128xf32>
    %cst_37 = arith.constant dense<0.000000e+00> : vector<128xf32>
    %370 = vector.multi_reduction <add>, %369, %cst_37 [0] : vector<32x128xf32> to vector<128xf32>
    %371 = vector.shape_cast %370 : vector<128xf32> to vector<1x128xf32>
    %372 = vector.extract_strided_slice %7 {offsets = [7, 0], sizes = [1, 128], strides = [1, 1]} : vector<8x128xf32> to vector<1x128xf32>
    %373 = vector.extract_strided_slice %7 {offsets = [5, 0], sizes = [1, 128], strides = [1, 1]} : vector<8x128xf32> to vector<1x128xf32>
    %374 = arith.mulf %372, %373 : vector<1x128xf32>
    %375 = arith.mulf %371, %374 : vector<1x128xf32>
    %376 = math.exp %375 : vector<1x128xf32>
    %377 = arith.addf %363, %376 : vector<1x128xf32>
    %378 = arith.addf %308, %376 : vector<1x128xf32>
    %379 = vector.extract_strided_slice %0 {offsets = [7, 0, 0], sizes = [1, 32, 128], strides = [1, 1, 1]} : vector<8x32x128xf32> to vector<1x32x128xf32>
    %380 = vector.shape_cast %379 : vector<1x32x128xf32> to vector<32x128xf32>
    %381 = vector.extract_strided_slice %0 {offsets = [6, 0, 0], sizes = [1, 32, 128], strides = [1, 1, 1]} : vector<8x32x128xf32> to vector<1x32x128xf32>
    %382 = vector.shape_cast %381 : vector<1x32x128xf32> to vector<32x128xf32>
    %383 = arith.mulf %380, %382 : vector<32x128xf32>
    %cst_38 = arith.constant dense<0.000000e+00> : vector<128xf32>
    %384 = vector.multi_reduction <add>, %383, %cst_38 [0] : vector<32x128xf32> to vector<128xf32>
    %385 = vector.shape_cast %384 : vector<128xf32> to vector<1x128xf32>
    %386 = vector.extract_strided_slice %7 {offsets = [7, 0], sizes = [1, 128], strides = [1, 1]} : vector<8x128xf32> to vector<1x128xf32>
    %387 = vector.extract_strided_slice %7 {offsets = [6, 0], sizes = [1, 128], strides = [1, 1]} : vector<8x128xf32> to vector<1x128xf32>
    %388 = arith.mulf %386, %387 : vector<1x128xf32>
    %389 = arith.mulf %385, %388 : vector<1x128xf32>
    %390 = math.exp %389 : vector<1x128xf32>
    %391 = arith.addf %377, %390 : vector<1x128xf32>
    %392 = arith.addf %307, %390 : vector<1x128xf32>
    %cst_39 = arith.constant 0.000000e+00 : f32
    %393 = vector.broadcast %cst_39 : f32 to vector<1x128xf32>
    %cst_40 = arith.constant 0.000000e+00 : f32
    %394 = vector.broadcast %cst_40 : f32 to vector<1x128xf32>
    %395 = arith.addf %322, %85 : vector<1x128xf32>
    %396 = math.log %395 : vector<1x128xf32>
    %397 = arith.subf %396, %18 : vector<1x128xf32>
    %398 = arith.addf %393, %397 : vector<1x128xf32>
    %399 = math.log %322 : vector<1x128xf32>
    %400 = arith.subf %396, %399 : vector<1x128xf32>
    %401 = arith.addf %394, %400 : vector<1x128xf32>
    %402 = arith.addf %336, %86 : vector<1x128xf32>
    %403 = math.log %402 : vector<1x128xf32>
    %404 = arith.subf %403, %29 : vector<1x128xf32>
    %405 = arith.addf %398, %404 : vector<1x128xf32>
    %406 = math.log %336 : vector<1x128xf32>
    %407 = arith.subf %403, %406 : vector<1x128xf32>
    %408 = arith.addf %401, %407 : vector<1x128xf32>
    %409 = arith.addf %350, %87 : vector<1x128xf32>
    %410 = math.log %409 : vector<1x128xf32>
    %411 = arith.subf %410, %40 : vector<1x128xf32>
    %412 = arith.addf %405, %411 : vector<1x128xf32>
    %413 = math.log %350 : vector<1x128xf32>
    %414 = arith.subf %410, %413 : vector<1x128xf32>
    %415 = arith.addf %408, %414 : vector<1x128xf32>
    %416 = arith.addf %364, %88 : vector<1x128xf32>
    %417 = math.log %416 : vector<1x128xf32>
    %418 = arith.subf %417, %51 : vector<1x128xf32>
    %419 = arith.addf %412, %418 : vector<1x128xf32>
    %420 = math.log %364 : vector<1x128xf32>
    %421 = arith.subf %417, %420 : vector<1x128xf32>
    %422 = arith.addf %415, %421 : vector<1x128xf32>
    %423 = arith.addf %378, %89 : vector<1x128xf32>
    %424 = math.log %423 : vector<1x128xf32>
    %425 = arith.subf %424, %62 : vector<1x128xf32>
    %426 = arith.addf %419, %425 : vector<1x128xf32>
    %427 = math.log %378 : vector<1x128xf32>
    %428 = arith.subf %424, %427 : vector<1x128xf32>
    %429 = arith.addf %422, %428 : vector<1x128xf32>
    %430 = arith.addf %392, %90 : vector<1x128xf32>
    %431 = math.log %430 : vector<1x128xf32>
    %432 = arith.subf %431, %73 : vector<1x128xf32>
    %433 = arith.addf %426, %432 : vector<1x128xf32>
    %434 = math.log %392 : vector<1x128xf32>
    %435 = arith.subf %431, %434 : vector<1x128xf32>
    %436 = arith.addf %429, %435 : vector<1x128xf32>
    %437 = arith.addf %391, %91 : vector<1x128xf32>
    %438 = math.log %437 : vector<1x128xf32>
    %439 = arith.subf %438, %84 : vector<1x128xf32>
    %440 = arith.addf %433, %439 : vector<1x128xf32>
    %441 = math.log %391 : vector<1x128xf32>
    %442 = arith.subf %438, %441 : vector<1x128xf32>
    %443 = arith.addf %436, %442 : vector<1x128xf32>
    %444 = tpu.concatenate %440, %443 in 0 : vector<1x128xf32>, vector<1x128xf32> -> vector<2x128xf32>
    %cst_41 = arith.constant 0.07341405 : f32
    %445 = vector.broadcast %cst_41 : f32 to vector<2x128xf32>
    %446 = arith.mulf %444, %445 : vector<2x128xf32>
    %c0_42 = arith.constant 0 : index
    %c0_43 = arith.constant 0 : index
    %447 = vector.load %arg2[%c0_42, %c0_43] : memref<2x128xf32, #tpu.memory_space<vmem>>, vector<2x128xf32>
    tpu.vector_store %arg2[%c0_42, %c0_43], %446 {strides = array<i32>} : memref<2x128xf32, #tpu.memory_space<vmem>>, vector<2x128xf32>,
    return
  }
  func.func @transform_0(%arg0: i32) -> (i32, i32, i32) {
    %c0_i32 = arith.constant 0 : i32
    %c0_i32_0 = arith.constant 0 : i32
    %c0_i32_1 = arith.constant 0 : i32
    return %c0_i32, %c0_i32_0, %arg0 : i32, i32, i32
  }
  func.func @transform_1(%arg0: i32) -> (i32, i32) {
    %c0_i32 = arith.constant 0 : i32
    %c0_i32_0 = arith.constant 0 : i32
    return %c0_i32, %arg0 : i32, i32
  }
}

</mosaic_0001>

<llo_original>
// kernel: tpu_custom_call.1
$region0: #{tpu_custom_call.1}
  #allocation0 [shape = 'u32[]', space=smem, size = 0x4, offset = 0x4, fixed_abs, tag = 'smem constant byte address 0x4 - core index']
  #allocation1 [shape = 'u32[144,128]{1,0:T(1,128)}', space=vmem, size = 0x12000, scoped, tag = 'internal scratch']
  %s0 = inlined_call_operand.hbm [shape: f32[8,32,256], index: 0, kind: input, shape index: {}]
  %s1 = inlined_call_operand.hbm [shape: f32[2,256], index: 1, kind: output, shape index: {}]
  %s2 = sld [smem:[#allocation0]]
  $region41: #{tpu_custom_call.1} parent=0
    _
  %s4 = ssub.s32 1, %s2
  %s5 = scalar_select 0, %s4, %s2
  $region1: #{tpu_custom_call.1} parent=0
    #allocation2 [shape = 'u8[262144]{0}', space=vmem, size = 0x40000, scoped, tag = 'input window, operand 0']
    #allocation3 [shape = 's32[2]{0}', space=sflag, size = 0x8, scoped, tag = 'scoped memory for tpu_custom_call.1']
    #allocation4 [shape = 's32[2]{0}', space=sflag, size = 0x8, scoped, tag = 'scoped memory for tpu_custom_call.1']
    #allocation5 [shape = 'u8[2048]{0}', space=vmem, size = 0x800, scoped, tag = 'output window, operand 0']
    %6 = vsyncpa [#allocation3], 0
    %s7 = scalar_lea.sflag [#allocation3], 1
    %8 = vsyncpa %s7, 0
    %9 = vsyncpa [#allocation4], 0
    %s10 = scalar_lea.sflag [#allocation4], 1
    %11 = vsyncpa %s10, 0
    loop: start=0, step=1, limit=4
    $region2: #{tpu_custom_call.1} parent=1 // loop_pre_header
      _
    $region3: #{tpu_custom_call.1} parent=1 // loop_header
      %s13 = sphi 0, %s17
      %p14 = scmp.ge.s32.totalorder %s13, 4
      %s23 = sphi 0, %s25
      %s26 = sphi 0, %s23
      %s27 = sphi 0, %s26
      %s43 = sphi 0, %s27
      %s49 = sphi 0, %s51
      %s52 = sphi 0, %s49
      %s53 = sphi 0, %s52
      %s69 = sphi 0, %s53
    $region4: #{tpu_custom_call.1} parent=1 // loop_header_branch
      %16 = sbr.rel (%p14) target = $region8
    $region5: #{tpu_custom_call.1} parent=1 // loop_body
      %s18 = ssub.s32 %s13, 1
      %s19 = ssub.s32 %s13, 2
      %s20 = sadd.s32 %s13, 1
      %s21 = ssub.s32 %s13, %s20
      %p22 = scmp.eq.s32.totalorder %s21, 0
      %s24 = sadd.s32 %s23, 1
      %s25 = scalar_select %p22, %s23, %s24
      %p28 = pneg %p22
      %p29 = scmp.eq.s32.totalorder %s13, 1
      %p30 = por %p28, %p29
      %p31 = scmp.ne.s32.totalorder %s23, %s26
      %p32 = scmp.eq.s32.totalorder %s13, 0
      %p33 = por %p31, %p32
      %p34 = scmp.ne.s32.totalorder %s23, %s26
      %p35 = scmp.eq.s32.totalorder %s18, 1
      %p36 = por %p34, %p35
      %p37 = scmp.ne.s32.totalorder %s26, %s27
      %p38 = scmp.eq.s32.totalorder %s18, 0
      %p39 = por %p37, %p38
      %p40 = scmp.ne.s32.totalorder %s26, %s27
      %p41 = scmp.eq.s32.totalorder %s19, 1
      %p42 = por %p40, %p41
      %p44 = scmp.ne.s32.totalorder %s27, %s43
      %p45 = scmp.eq.s32.totalorder %s19, 0
      %p46 = por %p44, %p45
      %s47 = ssub.s32 %s13, %s20
      %p48 = scmp.eq.s32.totalorder %s47, 0
      %s50 = sadd.s32 %s49, 1
      %s51 = scalar_select %p48, %s49, %s50
      %p54 = pneg %p48
      %p55 = scmp.eq.s32.totalorder %s13, 1
      %p56 = por %p54, %p55
      %p57 = scmp.ne.s32.totalorder %s49, %s52
      %p58 = scmp.eq.s32.totalorder %s13, 0
      %p59 = por %p57, %p58
      %p60 = scmp.ne.s32.totalorder %s49, %s52
      %p61 = scmp.eq.s32.totalorder %s18, 1
      %p62 = por %p60, %p61
      %p63 = scmp.ne.s32.totalorder %s52, %s53
      %p64 = scmp.eq.s32.totalorder %s18, 0
      %p65 = por %p63, %p64
      %p66 = scmp.ne.s32.totalorder %s52, %s53
      %p67 = scmp.eq.s32.totalorder %s19, 1
      %p68 = por %p66, %p67
      %p70 = scmp.ne.s32.totalorder %s53, %s69
      %p71 = scmp.eq.s32.totalorder %s19, 0
      %p72 = por %p70, %p71
      %p73 = scmp.le.s32.totalorder 1, %s13
      %p74 = scmp.lt.s32.totalorder %s13, 3
      %p75 = pnand %p73, %p74
      %p76 = pneg %p75
      // Predicated region
      $region9: #{tpu_custom_call.1} parent=5 // pred_check
        _
      $region10: #{tpu_custom_call.1} parent=5 // pred_check_branch
        %78 = sbr.rel (%p75) target = $region12
      $region11: #{tpu_custom_call.1} parent=5 // pred_region
        %s79 = ssub.s32 %s13, 1
      $region12: #{tpu_custom_call.1} parent=5 // pred_fallthru
        _
      %p80 = scmp.lt.s32.totalorder %s13, 2
      // Predicated region
      $region13: #{tpu_custom_call.1} parent=5 // pred_check
        %p81 = pneg %p80
      $region14: #{tpu_custom_call.1} parent=5 // pred_check_branch
        %83 = sbr.rel (%p81) target = $region16
      $region15: #{tpu_custom_call.1} parent=5 // pred_region
        // Predicated region
        $region17: #{tpu_custom_call.1} parent=15 // pred_check
          %p84 = pneg %p33
        $region18: #{tpu_custom_call.1} parent=15 // pred_check_branch
          %86 = sbr.rel (%p84) target = $region20
        $region19: #{tpu_custom_call.1} parent=15 // pred_region
          %s87 = sand.u32 %s23, 1
          %s88 = scalar_lea.sflag [#allocation3], %s87
          %s89 = sand.u32 %s23, 1
          %s90 = smul.addr %s89, 256
          %s91 = scalar_lea.vmem [#allocation2], %s90
          %s93 = ssub.s32 4096, 4096
          %94 = vsyncadd %s88, %s93
          %s95 = smul.addr %s13, 128
          %s96 = scalar_lea.hbm %s0, %s95
          %s97 = sshll.u32 %s91, 4
          %s98 = int_to_ptr.vmem [resolvable:$true] %s97
          %103 = dma.hbm_to_vmem [thread:$0]  %s96, 4096, %s98, %s88, 256, 128, 8
        $region20: #{tpu_custom_call.1} parent=15 // pred_fallthru
          _
      $region16: #{tpu_custom_call.1} parent=5 // pred_fallthru
        _
      %p104 = scmp.le.s32.totalorder 1, %s13
      %p105 = scmp.lt.s32.totalorder %s13, 3
      %p106 = pnand %p104, %p105
      %p107 = pneg %p106
      // Predicated region
      $region21: #{tpu_custom_call.1} parent=5 // pred_check
        _
      $region22: #{tpu_custom_call.1} parent=5 // pred_check_branch
        %109 = sbr.rel (%p106) target = $region24
      $region23: #{tpu_custom_call.1} parent=5 // pred_region
        %s110 = ssub.s32 %s13, 1
        %s111 = sand.u32 %s26, 1
        %s112 = scalar_lea.sflag [#allocation3], %s111
        %s113 = sand.u32 %s26, 1
        %s114 = smul.addr %s113, 256
        %s115 = scalar_lea.vmem [#allocation2], %s114
        // Predicated region
        $region25: #{tpu_custom_call.1} parent=23 // pred_check
          %p116 = pneg %p39
        $region26: #{tpu_custom_call.1} parent=23 // pred_check_branch
          %118 = sbr.rel (%p116) target = $region28
        $region27: #{tpu_custom_call.1} parent=23 // pred_region
          %119 = dma.done %s112, 4096
        $region28: #{tpu_custom_call.1} parent=23 // pred_fallthru
          _
        %s120 = sand.u32 %s26, 1
        %s121 = scalar_lea.sflag [#allocation3], %s120
        %s122 = sand.u32 %s26, 1
        %s123 = smul.addr %s122, 256
        %s124 = scalar_lea.vmem [#allocation2], %s123
        %p125 = pneg %p39
        %p126 = pneg %p36
        %p127 = pneg %p65
        %p128 = pneg %p62
        %s129 = sand.u32 %s52, 1
        %s130 = scalar_lea.sflag [#allocation4], %s129
        %s131 = sand.u32 %s52, 1
        %s132 = smul.addr %s131, 2
        %s133 = scalar_lea.vmem [#allocation5], %s132
        %v134 = vld [vmem:[%s115] sm:$0xff]
        %v135 = vld [vmem:[%s115 + $0x8] sm:$0xff]
        %v136 = vld [vmem:[%s115 + $0x10] sm:$0xff]
        %v137 = vld [vmem:[%s115 + $0x18] sm:$0xff]
        %v138 = vld [vmem:[%s115 + $0x20] sm:$0xff]
        %v139 = vld [vmem:[%s115 + $0x28] sm:$0xff]
        %v140 = vld [vmem:[%s115 + $0x30] sm:$0xff]
        %v141 = vld [vmem:[%s115 + $0x38] sm:$0xff]
        %v142 = vld [vmem:[%s115 + $0x40] sm:$0xff]
        %v143 = vld [vmem:[%s115 + $0x48] sm:$0xff]
        %v144 = vld [vmem:[%s115 + $0x50] sm:$0xff]
        %v145 = vld [vmem:[%s115 + $0x58] sm:$0xff]
        %v146 = vld [vmem:[%s115 + $0x60] sm:$0xff]
        %v147 = vld [vmem:[%s115 + $0x68] sm:$0xff]
        %v148 = vld [vmem:[%s115 + $0x70] sm:$0xff]
        %v149 = vld [vmem:[%s115 + $0x78] sm:$0xff]
        %v150 = vld [vmem:[%s115 + $0x80] sm:$0xff]
        %v151 = vld [vmem:[%s115 + $0x88] sm:$0xff]
        %v152 = vld [vmem:[%s115 + $0x90] sm:$0xff]
        %v153 = vld [vmem:[%s115 + $0x98] sm:$0xff]
        %v154 = vld [vmem:[%s115 + $0xa0] sm:$0xff]
        %v155 = vld [vmem:[%s115 + $0xa8] sm:$0xff]
        %v156 = vld [vmem:[%s115 + $0xb0] sm:$0xff]
        %v157 = vld [vmem:[%s115 + $0xb8] sm:$0xff]
        %v158 = vld [vmem:[%s115 + $0xc0] sm:$0xff]
        %v159 = vld [vmem:[%s115 + $0xc8] sm:$0xff]
        %v160 = vld [vmem:[%s115 + $0xd0] sm:$0xff]
        %v161 = vld [vmem:[%s115 + $0xd8] sm:$0xff]
        %v162 = vld [vmem:[%s115 + $0xe0] sm:$0xff]
        %v163 = vld [vmem:[%s115 + $0xe8] sm:$0xff]
        %v164 = vld [vmem:[%s115 + $0xf0] sm:$0xff]
        %v165 = vld [vmem:[%s115 + $0xf8] sm:$0xff]
        %v166 = vmul.f32 %v134, %v134
        %v167 = vmul.f32 %v135, %v135
        %v168 = vmul.f32 %v136, %v136
        %v169 = vmul.f32 %v137, %v137
        %v170 = vmul.f32 %v138, %v138
        %v171 = vmul.f32 %v139, %v139
        %v172 = vmul.f32 %v140, %v140
        %v173 = vmul.f32 %v141, %v141
        %v174 = vmul.f32 %v142, %v142
        %v175 = vmul.f32 %v143, %v143
        %v176 = vmul.f32 %v144, %v144
        %v177 = vmul.f32 %v145, %v145
        %v178 = vmul.f32 %v146, %v146
        %v179 = vmul.f32 %v147, %v147
        %v180 = vmul.f32 %v148, %v148
        %v181 = vmul.f32 %v149, %v149
        %v182 = vmul.f32 %v150, %v150
        %v183 = vmul.f32 %v151, %v151
        %v184 = vmul.f32 %v152, %v152
        %v185 = vmul.f32 %v153, %v153
        %v186 = vmul.f32 %v154, %v154
        %v187 = vmul.f32 %v155, %v155
        %v188 = vmul.f32 %v156, %v156
        %v189 = vmul.f32 %v157, %v157
        %v190 = vmul.f32 %v158, %v158
        %v191 = vmul.f32 %v159, %v159
        %v192 = vmul.f32 %v160, %v160
        %v193 = vmul.f32 %v161, %v161
        %v194 = vmul.f32 %v162, %v162
        %v195 = vmul.f32 %v163, %v163
        %v196 = vmul.f32 %v164, %v164
        %v197 = vmul.f32 %v165, %v165
        %v198 = vadd.f32 %v166, %v167
        %v199 = vadd.f32 %v198, %v168
        %v200 = vadd.f32 %v199, %v169
        %v201 = vrot.slane %v200, 4
        %v202 = vadd.f32 %v200, %v201
        %v203 = vrot.slane %v202, 2
        %v204 = vadd.f32 %v202, %v203
        %v205 = vrot.slane %v204, 1
        %v206 = vadd.f32 %v204, %v205
        %v207 = vadd.f32 %v170, %v171
        %v208 = vadd.f32 %v207, %v172
        %v209 = vadd.f32 %v208, %v173
        %v210 = vrot.slane %v209, 4
        %v211 = vadd.f32 %v209, %v210
        %v212 = vrot.slane %v211, 2
        %v213 = vadd.f32 %v211, %v212
        %v214 = vrot.slane %v213, 1
        %v215 = vadd.f32 %v213, %v214
        %v216 = vadd.f32 %v174, %v175
        %v217 = vadd.f32 %v216, %v176
        %v218 = vadd.f32 %v217, %v177
        %v219 = vrot.slane %v218, 4
        %v220 = vadd.f32 %v218, %v219
        %v221 = vrot.slane %v220, 2
        %v222 = vadd.f32 %v220, %v221
        %v223 = vrot.slane %v222, 1
        %v224 = vadd.f32 %v222, %v223
        %v225 = vadd.f32 %v178, %v179
        %v226 = vadd.f32 %v225, %v180
        %v227 = vadd.f32 %v226, %v181
        %v228 = vrot.slane %v227, 4
        %v229 = vadd.f32 %v227, %v228
        %v230 = vrot.slane %v229, 2
        %v231 = vadd.f32 %v229, %v230
        %v232 = vrot.slane %v231, 1
        %v233 = vadd.f32 %v231, %v232
        %v234 = vadd.f32 %v182, %v183
        %v235 = vadd.f32 %v234, %v184
        %v236 = vadd.f32 %v235, %v185
        %v237 = vrot.slane %v236, 4
        %v238 = vadd.f32 %v236, %v237
        %v239 = vrot.slane %v238, 2
        %v240 = vadd.f32 %v238, %v239
        %v241 = vrot.slane %v240, 1
        %v242 = vadd.f32 %v240, %v241
        %v243 = vadd.f32 %v186, %v187
        %v244 = vadd.f32 %v243, %v188
        %v245 = vadd.f32 %v244, %v189
        %v246 = vrot.slane %v245, 4
        %v247 = vadd.f32 %v245, %v246
        %v248 = vrot.slane %v247, 2
        %v249 = vadd.f32 %v247, %v248
        %v250 = vrot.slane %v249, 1
        %v251 = vadd.f32 %v249, %v250
        %v252 = vadd.f32 %v190, %v191
        %v253 = vadd.f32 %v252, %v192
        %v254 = vadd.f32 %v253, %v193
        %v255 = vrot.slane %v254, 4
        %v256 = vadd.f32 %v254, %v255
        %v257 = vrot.slane %v256, 2
        %v258 = vadd.f32 %v256, %v257
        %v259 = vrot.slane %v258, 1
        %v260 = vadd.f32 %v258, %v259
        %v261 = vadd.f32 %v194, %v195
        %v262 = vadd.f32 %v261, %v196
        %v263 = vadd.f32 %v262, %v197
        %v264 = vrot.slane %v263, 4
        %v265 = vadd.f32 %v263, %v264
        %v266 = vrot.slane %v265, 2
        %v267 = vadd.f32 %v265, %v266
        %v268 = vrot.slane %v267, 1
        %v269 = vadd.f32 %v267, %v268
        %v270 = vmax.f32 %v206, 1e-24
        %v271 = vmax.f32 %v215, 1e-24
        %v272 = vmax.f32 %v224, 1e-24
        %v273 = vmax.f32 %v233, 1e-24
        %v274 = vmax.f32 %v242, 1e-24
        %v275 = vmax.f32 %v251, 1e-24
        %v276 = vmax.f32 %v260, 1e-24
        %v277 = vmax.f32 %v269, 1e-24
        %v278 = vrsqrt.pop %v270
        %v279 = vrsqrt.pop %v271
        %v280 = vrsqrt.pop %v272
        %v281 = vrsqrt.pop %v273
        %v282 = vrsqrt.pop %v274
        %v283 = vrsqrt.pop %v275
        %v284 = vrsqrt.pop %v276
        %v285 = vrsqrt.pop %v277
        %v286 = vmul.f32 %v278, 3.1622777
        %v287 = vmul.f32 %v279, 3.1622777
        %v288 = vmul.f32 %v280, 3.1622777
        %v289 = vmul.f32 %v281, 3.1622777
        %v290 = vmul.f32 %v282, 3.1622777
        %v291 = vmul.f32 %v283, 3.1622777
        %v292 = vmul.f32 %v284, 3.1622777
        %v293 = vmul.f32 %v285, 3.1622777
        %v294 = vmul.f32 %v138, %v134
        %v295 = vmul.f32 %v139, %v135
        %v296 = vmul.f32 %v140, %v136
        %v297 = vmul.f32 %v141, %v137
        %v298 = vadd.f32 %v294, %v295
        %v299 = vadd.f32 %v298, %v296
        %v300 = vadd.f32 %v299, %v297
        %v301 = vrot.slane %v300, 4
        %v302 = vadd.f32 %v300, %v301
        %v303 = vrot.slane %v302, 2
        %v304 = vadd.f32 %v302, %v303
        %v305 = vrot.slane %v304, 1
        %v306 = vadd.f32 %v304, %v305
        %v307 = vmul.f32 %v287, %v286
        %v308 = vmul.f32 %v306, %v307
        %v309 = vmul.f32 %v142, %v134
        %v310 = vmul.f32 %v143, %v135
        %v311 = vmul.f32 %v144, %v136
        %v312 = vmul.f32 %v145, %v137
        %v313 = vadd.f32 %v309, %v310
        %v314 = vadd.f32 %v313, %v311
        %v315 = vadd.f32 %v314, %v312
        %v316 = vrot.slane %v315, 4
        %v317 = vadd.f32 %v315, %v316
        %v318 = vrot.slane %v317, 2
        %v319 = vadd.f32 %v317, %v318
        %v320 = vrot.slane %v319, 1
        %v321 = vadd.f32 %v319, %v320
        %v322 = vmul.f32 %v288, %v286
        %v323 = vmul.f32 %v321, %v322
        %v324 = vmul.f32 %v146, %v134
        %v325 = vmul.f32 %v147, %v135
        %v326 = vmul.f32 %v148, %v136
        %v327 = vmul.f32 %v149, %v137
        %v328 = vadd.f32 %v324, %v325
        %v329 = vadd.f32 %v328, %v326
        %v330 = vadd.f32 %v329, %v327
        %v331 = vrot.slane %v330, 4
        %v332 = vadd.f32 %v330, %v331
        %v333 = vrot.slane %v332, 2
        %v334 = vadd.f32 %v332, %v333
        %v335 = vrot.slane %v334, 1
        %v336 = vadd.f32 %v334, %v335
        %v337 = vmul.f32 %v289, %v286
        %v338 = vmul.f32 %v336, %v337
        %v339 = vmul.f32 %v150, %v134
        %v340 = vmul.f32 %v151, %v135
        %v341 = vmul.f32 %v152, %v136
        %v342 = vmul.f32 %v153, %v137
        %v343 = vadd.f32 %v339, %v340
        %v344 = vadd.f32 %v343, %v341
        %v345 = vadd.f32 %v344, %v342
        %v346 = vrot.slane %v345, 4
        %v347 = vadd.f32 %v345, %v346
        %v348 = vrot.slane %v347, 2
        %v349 = vadd.f32 %v347, %v348
        %v350 = vrot.slane %v349, 1
        %v351 = vadd.f32 %v349, %v350
        %v352 = vmul.f32 %v290, %v286
        %v353 = vmul.f32 %v351, %v352
        %v354 = vmul.f32 %v154, %v134
        %v355 = vmul.f32 %v155, %v135
        %v356 = vmul.f32 %v156, %v136
        %v357 = vmul.f32 %v157, %v137
        %v358 = vadd.f32 %v354, %v355
        %v359 = vadd.f32 %v358, %v356
        %v360 = vadd.f32 %v359, %v357
        %v361 = vrot.slane %v360, 4
        %v362 = vadd.f32 %v360, %v361
        %v363 = vrot.slane %v362, 2
        %v364 = vadd.f32 %v362, %v363
        %v365 = vrot.slane %v364, 1
        %v366 = vadd.f32 %v364, %v365
        %v367 = vmul.f32 %v291, %v286
        %v368 = vmul.f32 %v366, %v367
        %v369 = vmul.f32 %v158, %v134
        %v370 = vmul.f32 %v159, %v135
        %v371 = vmul.f32 %v160, %v136
        %v372 = vmul.f32 %v161, %v137
        %v373 = vadd.f32 %v369, %v370
        %v374 = vadd.f32 %v373, %v371
        %v375 = vadd.f32 %v374, %v372
        %v376 = vrot.slane %v375, 4
        %v377 = vadd.f32 %v375, %v376
        %v378 = vrot.slane %v377, 2
        %v379 = vadd.f32 %v377, %v378
        %v380 = vrot.slane %v379, 1
        %v381 = vadd.f32 %v379, %v380
        %v382 = vmul.f32 %v292, %v286
        %v383 = vmul.f32 %v381, %v382
        %v384 = vmul.f32 %v162, %v134
        %v385 = vmul.f32 %v163, %v135
        %v386 = vmul.f32 %v164, %v136
        %v387 = vmul.f32 %v165, %v137
        %v388 = vadd.f32 %v384, %v385
        %v389 = vadd.f32 %v388, %v386
        %v390 = vadd.f32 %v389, %v387
        %v391 = vrot.slane %v390, 4
        %v392 = vadd.f32 %v390, %v391
        %v393 = vrot.slane %v392, 2
        %v394 = vadd.f32 %v392, %v393
        %v395 = vrot.slane %v394, 1
        %v396 = vadd.f32 %v394, %v395
        %v397 = vmul.f32 %v293, %v286
        %v398 = vmul.f32 %v396, %v397
        %v399 = vmul.f32 %v308, 1.442695
        %v400 = vpow.pop %v399
        %v401 = vmul.f32 %v323, 1.442695
        %v402 = vpow.pop %v401
        %v403 = vmul.f32 %v338, 1.442695
        %v404 = vpow.pop %v403
        %v405 = vmul.f32 %v353, 1.442695
        %v406 = vpow.pop %v405
        %v407 = vmul.f32 %v368, 1.442695
        %v408 = vpow.pop %v407
        %v409 = vmul.f32 %v383, 1.442695
        %v410 = vpow.pop %v409
        %v411 = vmul.f32 %v398, 1.442695
        %v412 = vpow.pop %v411
        %v413 = vmul.f32 %v142, %v138
        %v414 = vmul.f32 %v143, %v139
        %v415 = vmul.f32 %v144, %v140
        %v416 = vmul.f32 %v145, %v141
        %v417 = vadd.f32 %v413, %v414
        %v418 = vadd.f32 %v417, %v415
        %v419 = vadd.f32 %v418, %v416
        %v420 = vrot.slane %v419, 4
        %v421 = vadd.f32 %v419, %v420
        %v422 = vrot.slane %v421, 2
        %v423 = vadd.f32 %v421, %v422
        %v424 = vrot.slane %v423, 1
        %v425 = vadd.f32 %v423, %v424
        %v426 = vmul.f32 %v288, %v287
        %v427 = vmul.f32 %v425, %v426
        %v428 = vmul.f32 %v427, 1.442695
        %v429 = vpow.pop %v428
        %v430 = vadd.f32 %v429, 0.0
        %v431 = vmul.f32 %v146, %v138
        %v432 = vmul.f32 %v147, %v139
        %v433 = vmul.f32 %v148, %v140
        %v434 = vmul.f32 %v149, %v141
        %v435 = vadd.f32 %v431, %v432
        %v436 = vadd.f32 %v435, %v433
        %v437 = vadd.f32 %v436, %v434
        %v438 = vrot.slane %v437, 4
        %v439 = vadd.f32 %v437, %v438
        %v440 = vrot.slane %v439, 2
        %v441 = vadd.f32 %v439, %v440
        %v442 = vrot.slane %v441, 1
        %v443 = vadd.f32 %v441, %v442
        %v444 = vmul.f32 %v289, %v287
        %v445 = vmul.f32 %v443, %v444
        %v446 = vmul.f32 %v445, 1.442695
        %v447 = vpow.pop %v446
        %v448 = vadd.f32 %v447, 0.0
        %v449 = vadd.f32 %v430, %v447
        %v450 = vmul.f32 %v146, %v142
        %v451 = vmul.f32 %v147, %v143
        %v452 = vmul.f32 %v148, %v144
        %v453 = vmul.f32 %v149, %v145
        %v454 = vadd.f32 %v450, %v451
        %v455 = vadd.f32 %v454, %v452
        %v456 = vadd.f32 %v455, %v453
        %v457 = vrot.slane %v456, 4
        %v458 = vadd.f32 %v456, %v457
        %v459 = vrot.slane %v458, 2
        %v460 = vadd.f32 %v458, %v459
        %v461 = vrot.slane %v460, 1
        %v462 = vadd.f32 %v460, %v461
        %v463 = vmul.f32 %v289, %v288
        %v464 = vmul.f32 %v462, %v463
        %v465 = vmul.f32 %v464, 1.442695
        %v466 = vpow.pop %v465
        %v467 = vadd.f32 %v448, %v466
        %v468 = vadd.f32 %v430, %v466
        %v469 = vmul.f32 %v150, %v138
        %v470 = vmul.f32 %v151, %v139
        %v471 = vmul.f32 %v152, %v140
        %v472 = vmul.f32 %v153, %v141
        %v473 = vadd.f32 %v469, %v470
        %v474 = vadd.f32 %v473, %v471
        %v475 = vadd.f32 %v474, %v472
        %v476 = vrot.slane %v475, 4
        %v477 = vadd.f32 %v475, %v476
        %v478 = vrot.slane %v477, 2
        %v479 = vadd.f32 %v477, %v478
        %v480 = vrot.slane %v479, 1
        %v481 = vadd.f32 %v479, %v480
        %v482 = vmul.f32 %v290, %v287
        %v483 = vmul.f32 %v481, %v482
        %v484 = vmul.f32 %v483, 1.442695
        %v485 = vpow.pop %v484
        %v486 = vadd.f32 %v485, 0.0
        %v487 = vadd.f32 %v449, %v485
        %v488 = vmul.f32 %v150, %v142
        %v489 = vmul.f32 %v151, %v143
        %v490 = vmul.f32 %v152, %v144
        %v491 = vmul.f32 %v153, %v145
        %v492 = vadd.f32 %v488, %v489
        %v493 = vadd.f32 %v492, %v490
        %v494 = vadd.f32 %v493, %v491
        %v495 = vrot.slane %v494, 4
        %v496 = vadd.f32 %v494, %v495
        %v497 = vrot.slane %v496, 2
        %v498 = vadd.f32 %v496, %v497
        %v499 = vrot.slane %v498, 1
        %v500 = vadd.f32 %v498, %v499
        %v501 = vmul.f32 %v290, %v288
        %v502 = vmul.f32 %v500, %v501
        %v503 = vmul.f32 %v502, 1.442695
        %v504 = vpow.pop %v503
        %v505 = vadd.f32 %v486, %v504
        %v506 = vadd.f32 %v468, %v504
        %v507 = vmul.f32 %v150, %v146
        %v508 = vmul.f32 %v151, %v147
        %v509 = vmul.f32 %v152, %v148
        %v510 = vmul.f32 %v153, %v149
        %v511 = vadd.f32 %v507, %v508
        %v512 = vadd.f32 %v511, %v509
        %v513 = vadd.f32 %v512, %v510
        %v514 = vrot.slane %v513, 4
        %v515 = vadd.f32 %v513, %v514
        %v516 = vrot.slane %v515, 2
        %v517 = vadd.f32 %v515, %v516
        %v518 = vrot.slane %v517, 1
        %v519 = vadd.f32 %v517, %v518
        %v520 = vmul.f32 %v290, %v289
        %v521 = vmul.f32 %v519, %v520
        %v522 = vmul.f32 %v521, 1.442695
        %v523 = vpow.pop %v522
        %v524 = vadd.f32 %v505, %v523
        %v525 = vadd.f32 %v467, %v523
        %v526 = vmul.f32 %v154, %v138
        %v527 = vmul.f32 %v155, %v139
        %v528 = vmul.f32 %v156, %v140
        %v529 = vmul.f32 %v157, %v141
        %v530 = vadd.f32 %v526, %v527
        %v531 = vadd.f32 %v530, %v528
        %v532 = vadd.f32 %v531, %v529
        %v533 = vrot.slane %v532, 4
        %v534 = vadd.f32 %v532, %v533
        %v535 = vrot.slane %v534, 2
        %v536 = vadd.f32 %v534, %v535
        %v537 = vrot.slane %v536, 1
        %v538 = vadd.f32 %v536, %v537
        %v539 = vmul.f32 %v291, %v287
        %v540 = vmul.f32 %v538, %v539
        %v541 = vmul.f32 %v540, 1.442695
        %v542 = vpow.pop %v541
        %v543 = vadd.f32 %v542, 0.0
        %v544 = vadd.f32 %v487, %v542
        %v545 = vmul.f32 %v154, %v142
        %v546 = vmul.f32 %v155, %v143
        %v547 = vmul.f32 %v156, %v144
        %v548 = vmul.f32 %v157, %v145
        %v549 = vadd.f32 %v545, %v546
        %v550 = vadd.f32 %v549, %v547
        %v551 = vadd.f32 %v550, %v548
        %v552 = vrot.slane %v551, 4
        %v553 = vadd.f32 %v551, %v552
        %v554 = vrot.slane %v553, 2
        %v555 = vadd.f32 %v553, %v554
        %v556 = vrot.slane %v555, 1
        %v557 = vadd.f32 %v555, %v556
        %v558 = vmul.f32 %v291, %v288
        %v559 = vmul.f32 %v557, %v558
        %v560 = vmul.f32 %v559, 1.442695
        %v561 = vpow.pop %v560
        %v562 = vadd.f32 %v543, %v561
        %v563 = vadd.f32 %v506, %v561
        %v564 = vmul.f32 %v154, %v146
        %v565 = vmul.f32 %v155, %v147
        %v566 = vmul.f32 %v156, %v148
        %v567 = vmul.f32 %v157, %v149
        %v568 = vadd.f32 %v564, %v565
        %v569 = vadd.f32 %v568, %v566
        %v570 = vadd.f32 %v569, %v567
        %v571 = vrot.slane %v570, 4
        %v572 = vadd.f32 %v570, %v571
        %v573 = vrot.slane %v572, 2
        %v574 = vadd.f32 %v572, %v573
        %v575 = vrot.slane %v574, 1
        %v576 = vadd.f32 %v574, %v575
        %v577 = vmul.f32 %v291, %v289
        %v578 = vmul.f32 %v576, %v577
        %v579 = vmul.f32 %v578, 1.442695
        %v580 = vpow.pop %v579
        %v581 = vadd.f32 %v562, %v580
        %v582 = vadd.f32 %v525, %v580
        %v583 = vmul.f32 %v154, %v150
        %v584 = vmul.f32 %v155, %v151
        %v585 = vmul.f32 %v156, %v152
        %v586 = vmul.f32 %v157, %v153
        %v587 = vadd.f32 %v583, %v584
        %v588 = vadd.f32 %v587, %v585
        %v589 = vadd.f32 %v588, %v586
        %v590 = vrot.slane %v589, 4
        %v591 = vadd.f32 %v589, %v590
        %v592 = vrot.slane %v591, 2
        %v593 = vadd.f32 %v591, %v592
        %v594 = vrot.slane %v593, 1
        %v595 = vadd.f32 %v593, %v594
        %v596 = vmul.f32 %v291, %v290
        %v597 = vmul.f32 %v595, %v596
        %v598 = vmul.f32 %v597, 1.442695
        %v599 = vpow.pop %v598
        %v600 = vadd.f32 %v581, %v599
        %v601 = vadd.f32 %v524, %v599
        %v602 = vmul.f32 %v158, %v138
        %v603 = vmul.f32 %v159, %v139
        %v604 = vmul.f32 %v160, %v140
        %v605 = vmul.f32 %v161, %v141
        %v606 = vadd.f32 %v602, %v603
        %v607 = vadd.f32 %v606, %v604
        %v608 = vadd.f32 %v607, %v605
        %v609 = vrot.slane %v608, 4
        %v610 = vadd.f32 %v608, %v609
        %v611 = vrot.slane %v610, 2
        %v612 = vadd.f32 %v610, %v611
        %v613 = vrot.slane %v612, 1
        %v614 = vadd.f32 %v612, %v613
        %v615 = vmul.f32 %v292, %v287
        %v616 = vmul.f32 %v614, %v615
        %v617 = vmul.f32 %v616, 1.442695
        %v618 = vpow.pop %v617
        %v619 = vadd.f32 %v618, 0.0
        %v620 = vadd.f32 %v544, %v618
        %v621 = vmul.f32 %v158, %v142
        %v622 = vmul.f32 %v159, %v143
        %v623 = vmul.f32 %v160, %v144
        %v624 = vmul.f32 %v161, %v145
        %v625 = vadd.f32 %v621, %v622
        %v626 = vadd.f32 %v625, %v623
        %v627 = vadd.f32 %v626, %v624
        %v628 = vrot.slane %v627, 4
        %v629 = vadd.f32 %v627, %v628
        %v630 = vrot.slane %v629, 2
        %v631 = vadd.f32 %v629, %v630
        %v632 = vrot.slane %v631, 1
        %v633 = vadd.f32 %v631, %v632
        %v634 = vmul.f32 %v292, %v288
        %v635 = vmul.f32 %v633, %v634
        %v636 = vmul.f32 %v635, 1.442695
        %v637 = vpow.pop %v636
        %v638 = vadd.f32 %v619, %v637
        %v639 = vadd.f32 %v563, %v637
        %v640 = vmul.f32 %v158, %v146
        %v641 = vmul.f32 %v159, %v147
        %v642 = vmul.f32 %v160, %v148
        %v643 = vmul.f32 %v161, %v149
        %v644 = vadd.f32 %v640, %v641
        %v645 = vadd.f32 %v644, %v642
        %v646 = vadd.f32 %v645, %v643
        %v647 = vrot.slane %v646, 4
        %v648 = vadd.f32 %v646, %v647
        %v649 = vrot.slane %v648, 2
        %v650 = vadd.f32 %v648, %v649
        %v651 = vrot.slane %v650, 1
        %v652 = vadd.f32 %v650, %v651
        %v653 = vmul.f32 %v292, %v289
        %v654 = vmul.f32 %v652, %v653
        %v655 = vmul.f32 %v654, 1.442695
        %v656 = vpow.pop %v655
        %v657 = vadd.f32 %v638, %v656
        %v658 = vadd.f32 %v582, %v656
        %v659 = vmul.f32 %v158, %v150
        %v660 = vmul.f32 %v159, %v151
        %v661 = vmul.f32 %v160, %v152
        %v662 = vmul.f32 %v161, %v153
        %v663 = vadd.f32 %v659, %v660
        %v664 = vadd.f32 %v663, %v661
        %v665 = vadd.f32 %v664, %v662
        %v666 = vrot.slane %v665, 4
        %v667 = vadd.f32 %v665, %v666
        %v668 = vrot.slane %v667, 2
        %v669 = vadd.f32 %v667, %v668
        %v670 = vrot.slane %v669, 1
        %v671 = vadd.f32 %v669, %v670
        %v672 = vmul.f32 %v292, %v290
        %v673 = vmul.f32 %v671, %v672
        %v674 = vmul.f32 %v673, 1.442695
        %v675 = vpow.pop %v674
        %v676 = vadd.f32 %v657, %v675
        %v677 = vadd.f32 %v601, %v675
        %v678 = vmul.f32 %v158, %v154
        %v679 = vmul.f32 %v159, %v155
        %v680 = vmul.f32 %v160, %v156
        %v681 = vmul.f32 %v161, %v157
        %v682 = vadd.f32 %v678, %v679
        %v683 = vadd.f32 %v682, %v680
        %v684 = vadd.f32 %v683, %v681
        %v685 = vrot.slane %v684, 4
        %v686 = vadd.f32 %v684, %v685
        %v687 = vrot.slane %v686, 2
        %v688 = vadd.f32 %v686, %v687
        %v689 = vrot.slane %v688, 1
        %v690 = vadd.f32 %v688, %v689
        %v691 = vmul.f32 %v292, %v291
        %v692 = vmul.f32 %v690, %v691
        %v693 = vmul.f32 %v692, 1.442695
        %v694 = vpow.pop %v693
        %v695 = vadd.f32 %v676, %v694
        %v696 = vadd.f32 %v600, %v694
        %v697 = vmul.f32 %v162, %v138
        %v698 = vmul.f32 %v163, %v139
        %v699 = vmul.f32 %v164, %v140
        %v700 = vmul.f32 %v165, %v141
        %v701 = vadd.f32 %v697, %v698
        %v702 = vadd.f32 %v701, %v699
        %v703 = vadd.f32 %v702, %v700
        %v704 = vrot.slane %v703, 4
        %v705 = vadd.f32 %v703, %v704
        %v706 = vrot.slane %v705, 2
        %v707 = vadd.f32 %v705, %v706
        %v708 = vrot.slane %v707, 1
        %v709 = vadd.f32 %v707, %v708
        %v710 = vmul.f32 %v293, %v287
        %v711 = vmul.f32 %v709, %v710
        %v712 = vmul.f32 %v711, 1.442695
        %v713 = vpow.pop %v712
        %v714 = vadd.f32 %v713, 0.0
        %v715 = vadd.f32 %v620, %v713
        %v716 = vmul.f32 %v162, %v142
        %v717 = vmul.f32 %v163, %v143
        %v718 = vmul.f32 %v164, %v144
        %v719 = vmul.f32 %v165, %v145
        %v720 = vadd.f32 %v716, %v717
        %v721 = vadd.f32 %v720, %v718
        %v722 = vadd.f32 %v721, %v719
        %v723 = vrot.slane %v722, 4
        %v724 = vadd.f32 %v722, %v723
        %v725 = vrot.slane %v724, 2
        %v726 = vadd.f32 %v724, %v725
        %v727 = vrot.slane %v726, 1
        %v728 = vadd.f32 %v726, %v727
        %v729 = vmul.f32 %v293, %v288
        %v730 = vmul.f32 %v728, %v729
        %v731 = vmul.f32 %v730, 1.442695
        %v732 = vpow.pop %v731
        %v733 = vadd.f32 %v714, %v732
        %v734 = vadd.f32 %v639, %v732
        %v735 = vmul.f32 %v162, %v146
        %v736 = vmul.f32 %v163, %v147
        %v737 = vmul.f32 %v164, %v148
        %v738 = vmul.f32 %v165, %v149
        %v739 = vadd.f32 %v735, %v736
        %v740 = vadd.f32 %v739, %v737
        %v741 = vadd.f32 %v740, %v738
        %v742 = vrot.slane %v741, 4
        %v743 = vadd.f32 %v741, %v742
        %v744 = vrot.slane %v743, 2
        %v745 = vadd.f32 %v743, %v744
        %v746 = vrot.slane %v745, 1
        %v747 = vadd.f32 %v745, %v746
        %v748 = vmul.f32 %v293, %v289
        %v749 = vmul.f32 %v747, %v748
        %v750 = vmul.f32 %v749, 1.442695
        %v751 = vpow.pop %v750
        %v752 = vadd.f32 %v733, %v751
        %v753 = vadd.f32 %v658, %v751
        %v754 = vmul.f32 %v162, %v150
        %v755 = vmul.f32 %v163, %v151
        %v756 = vmul.f32 %v164, %v152
        %v757 = vmul.f32 %v165, %v153
        %v758 = vadd.f32 %v754, %v755
        %v759 = vadd.f32 %v758, %v756
        %v760 = vadd.f32 %v759, %v757
        %v761 = vrot.slane %v760, 4
        %v762 = vadd.f32 %v760, %v761
        %v763 = vrot.slane %v762, 2
        %v764 = vadd.f32 %v762, %v763
        %v765 = vrot.slane %v764, 1
        %v766 = vadd.f32 %v764, %v765
        %v767 = vmul.f32 %v293, %v290
        %v768 = vmul.f32 %v766, %v767
        %v769 = vmul.f32 %v768, 1.442695
        %v770 = vpow.pop %v769
        %v771 = vadd.f32 %v752, %v770
        %v772 = vadd.f32 %v677, %v770
        %v773 = vmul.f32 %v162, %v154
        %v774 = vmul.f32 %v163, %v155
        %v775 = vmul.f32 %v164, %v156
        %v776 = vmul.f32 %v165, %v157
        %v777 = vadd.f32 %v773, %v774
        %v778 = vadd.f32 %v777, %v775
        %v779 = vadd.f32 %v778, %v776
        %v780 = vrot.slane %v779, 4
        %v781 = vadd.f32 %v779, %v780
        %v782 = vrot.slane %v781, 2
        %v783 = vadd.f32 %v781, %v782
        %v784 = vrot.slane %v783, 1
        %v785 = vadd.f32 %v783, %v784
        %v786 = vmul.f32 %v293, %v291
        %v787 = vmul.f32 %v785, %v786
        %v788 = vmul.f32 %v787, 1.442695
        %v789 = vpow.pop %v788
        %v790 = vadd.f32 %v771, %v789
        %v791 = vadd.f32 %v696, %v789
        %v792 = vmul.f32 %v162, %v158
        %v793 = vmul.f32 %v163, %v159
        %v794 = vmul.f32 %v164, %v160
        %v795 = vmul.f32 %v165, %v161
        %v796 = vadd.f32 %v792, %v793
        %v797 = vadd.f32 %v796, %v794
        %v798 = vadd.f32 %v797, %v795
        %v799 = vrot.slane %v798, 4
        %v800 = vadd.f32 %v798, %v799
        %v801 = vrot.slane %v800, 2
        %v802 = vadd.f32 %v800, %v801
        %v803 = vrot.slane %v802, 1
        %v804 = vadd.f32 %v802, %v803
        %v805 = vmul.f32 %v293, %v292
        %v806 = vmul.f32 %v804, %v805
        %v807 = vmul.f32 %v806, 1.442695
        %v808 = vpow.pop %v807
        %v809 = vadd.f32 %v790, %v808
        %v810 = vadd.f32 %v695, %v808
        %v811 = vadd.f32 %v715, %v400
        %v812 = vlog2.pop %v811
        %v813 = vmul.f32 %v812, 0.6931472
        %v814 = vsub.f32 %v813, %v308
        %v815 = vadd.f32 %v814, 0.0
        %v816 = vlog2.pop %v715
        %v817 = vmul.f32 %v816, 0.6931472
        %v818 = vsub.f32 %v813, %v817
        %v819 = vadd.f32 %v818, 0.0
        %v820 = vadd.f32 %v734, %v402
        %v821 = vlog2.pop %v820
        %v822 = vmul.f32 %v821, 0.6931472
        %v823 = vsub.f32 %v822, %v323
        %v824 = vadd.f32 %v815, %v823
        %v825 = vlog2.pop %v734
        %v826 = vmul.f32 %v825, 0.6931472
        %v827 = vsub.f32 %v822, %v826
        %v828 = vadd.f32 %v819, %v827
        %v829 = vadd.f32 %v753, %v404
        %v830 = vlog2.pop %v829
        %v831 = vmul.f32 %v830, 0.6931472
        %v832 = vsub.f32 %v831, %v338
        %v833 = vadd.f32 %v824, %v832
        %v834 = vlog2.pop %v753
        %v835 = vmul.f32 %v834, 0.6931472
        %v836 = vsub.f32 %v831, %v835
        %v837 = vadd.f32 %v828, %v836
        %v838 = vadd.f32 %v772, %v406
        %v839 = vlog2.pop %v838
        %v840 = vmul.f32 %v839, 0.6931472
        %v841 = vsub.f32 %v840, %v353
        %v842 = vadd.f32 %v833, %v841
        %v843 = vlog2.pop %v772
        %v844 = vmul.f32 %v843, 0.6931472
        %v845 = vsub.f32 %v840, %v844
        %v846 = vadd.f32 %v837, %v845
        %v847 = vadd.f32 %v791, %v408
        %v848 = vlog2.pop %v847
        %v849 = vmul.f32 %v848, 0.6931472
        %v850 = vsub.f32 %v849, %v368
        %v851 = vadd.f32 %v842, %v850
        %v852 = vlog2.pop %v791
        %v853 = vmul.f32 %v852, 0.6931472
        %v854 = vsub.f32 %v849, %v853
        %v855 = vadd.f32 %v846, %v854
        %v856 = vadd.f32 %v810, %v410
        %v857 = vlog2.pop %v856
        %v858 = vmul.f32 %v857, 0.6931472
        %v859 = vsub.f32 %v858, %v383
        %v860 = vadd.f32 %v851, %v859
        %v861 = vlog2.pop %v810
        %v862 = vmul.f32 %v861, 0.6931472
        %v863 = vsub.f32 %v858, %v862
        %v864 = vadd.f32 %v855, %v863
        %v865 = vadd.f32 %v809, %v412
        %v866 = vlog2.pop %v865
        %v867 = vmul.f32 %v866, 0.6931472
        %v868 = vsub.f32 %v867, %v398
        %v869 = vadd.f32 %v860, %v868
        %v870 = vlog2.pop %v809
        %v871 = vmul.f32 %v870, 0.6931472
        %v872 = vsub.f32 %v867, %v871
        %v873 = vadd.f32 %v864, %v872
        %vm874 = vcmask 1040384
        %v875 = vsel %vm874, %v869, %v873
        %v876 = vmul.f32 %v875, 0.07341405
        %877 = vst [vmem:[%s133] sm:$0x3] %v876
        %s878 = sand.u32 %s52, 1
        %s879 = scalar_lea.sflag [#allocation4], %s878
        %s880 = sand.u32 %s52, 1
        %s881 = smul.addr %s880, 2
        %s882 = scalar_lea.vmem [#allocation5], %s881
        // Predicated region
        $region29: #{tpu_custom_call.1} parent=23 // pred_check
          %p883 = pneg %p62
        $region30: #{tpu_custom_call.1} parent=23 // pred_check_branch
          %885 = sbr.rel (%p883) target = $region32
        $region31: #{tpu_custom_call.1} parent=23 // pred_region
          %s887 = ssub.s32 32, 32
          %888 = vsyncadd %s879, %s887
          %s889 = smul.addr %s18, 32
          %s890 = scalar_lea.hbm %s1, %s889
          %s892 = sshll.u32 %s882, 4
          %s893 = int_to_ptr.vmem [resolvable:$true] %s892
          %895 = dma.vmem_to_hbm [thread:$0]  %s893, 32, %s890, %s879
        $region32: #{tpu_custom_call.1} parent=23 // pred_fallthru
          _
      $region24: #{tpu_custom_call.1} parent=5 // pred_fallthru
        _
      %p896 = scmp.le.s32.totalorder 2, %s13
      // Predicated region
      $region33: #{tpu_custom_call.1} parent=5 // pred_check
        %p897 = pneg %p896
      $region34: #{tpu_custom_call.1} parent=5 // pred_check_branch
        %899 = sbr.rel (%p897) target = $region36
      $region35: #{tpu_custom_call.1} parent=5 // pred_region
        %s900 = ssub.s32 %s13, 2
        // Predicated region
        $region37: #{tpu_custom_call.1} parent=35 // pred_check
          %p901 = pneg %p68
        $region38: #{tpu_custom_call.1} parent=35 // pred_check_branch
          %903 = sbr.rel (%p901) target = $region40
        $region39: #{tpu_custom_call.1} parent=35 // pred_region
          %s904 = sand.u32 %s53, 1
          %s905 = scalar_lea.sflag [#allocation4], %s904
          %s906 = sand.u32 %s53, 1
          %s907 = smul.addr %s906, 2
          %s908 = scalar_lea.vmem [#allocation5], %s907
          %909 = dma.done %s905, 32
        $region40: #{tpu_custom_call.1} parent=35 // pred_fallthru
          _
      $region36: #{tpu_custom_call.1} parent=5 // pred_fallthru
        _
    $region6: #{tpu_custom_call.1} parent=1 // loop_footer
      %s17 = sadd.s32 1, %s13
    $region7: #{tpu_custom_call.1} parent=1 // loop_footer_branch
      %12 = sbr.rel target = $region3
    $region8: #{tpu_custom_call.1} parent=1 // loop_exit
      _
    %910 = vsyncpa [#allocation3], 1
    %s911 = scalar_lea.sflag [#allocation3], 1
    %912 = vsyncpa %s911, 1
    %913 = vsyncpa [#allocation4], 1
    %s914 = scalar_lea.sflag [#allocation4], 1
    %915 = vsyncpa %s914, 1

</llo_original>
